<compile_context>
chip_gen: v7x
topology: tpu7x:2x2x1
jax: 0.10.0
libtpu: 0.0.40
codegen_flags: <defaults>
</compile_context>

<pallas_src>
import functools

import jax
import jax.numpy as jnp
from jax.experimental import pallas as pl
from jax.experimental.pallas import tpu as pltpu


def _conv_bn_relu_kernel(xc_ref, xh_ref, w_ref, b_ref, o_ref, *, wp):
    # xc_ref: (1, Cin, T)     current flat tile (bf16)
    # xh_ref: (1, Cin, halo)  halo = first `halo` lanes of the next tile (bf16)
    # w_ref : (9, Cout, Cin)  BN-scale-folded tap weights (f32), k = dy*3 + dx
    # b_ref : (Cout, 1)       folded bias = (conv_b - mean)*scale + beta (f32)
    # o_ref : (1, Cout, T)    lane-dense output tile (f32)
    cout = o_ref.shape[1]
    t_len = o_ref.shape[2]

    # bf16 stream from HBM, one cheap VPU cast to f32 in VMEM.
    win = jnp.concatenate(
        [xc_ref[0].astype(jnp.float32), xh_ref[0].astype(jnp.float32)],
        axis=-1)                                           # (Cin, T + halo)

    acc = jnp.zeros((cout, t_len), jnp.float32)
    k = 0
    for dy in range(3):
        for dx in range(3):
            off = dy * wp + dx                             # static flat tap offset
            tap = jax.lax.slice_in_dim(win, off, off + t_len, axis=1)  # (Cin, T)
            acc = acc + jnp.dot(w_ref[k], tap,
                                preferred_element_type=jnp.float32)    # MXU
            k += 1

    o_ref[0] = jnp.maximum(acc + b_ref[...], 0.0)


def _round_up(a, m):
    return ((a + m - 1) // m) * m


def _pick_tiles(lo_len, wp):
    """Lane tile T (multiple of 128 and of `halo`) and halo width."""
    halo = _round_up(2 * wp + 2, 128)      # taps reach at most 2*Wp+2 lanes ahead
    cap = 32 * 1024                        # ~1 MiB f32 output block per grid step
    n_tiles = max(1, pl.cdiv(lo_len, max(cap, halo)))
    t = _round_up(pl.cdiv(lo_len, n_tiles), halo)   # multiple of halo => of 128
    return t, halo


@jax.jit
def inf_input_forward(x_nchw, weight, conv_bias, gamma, beta, running_mean,
                      running_var, eps=1e-5):
    """Conv2d(3x3, pad=1) + BatchNorm2d (running stats) + ReLU, NCHW in/out."""
    N, Cin, H, W = x_nchw.shape
    Cout = weight.shape[0]
    Wp = W + 2                                 # padded row width
    lo_len = H * Wp                            # flat output length needed per image

    # ---- BN folding (tiny, one-time, plain JAX) ----
    scale = gamma / jnp.sqrt(running_var + eps)                         # (Cout,)
    w9 = (weight * scale[:, None, None, None]).astype(jnp.float32)      # (Cout,Cin,3,3)
    w9 = jnp.transpose(w9, (2, 3, 0, 1)).reshape(9, Cout, Cin)          # k = dy*3+dx
    bias = ((conv_bias - running_mean) * scale + beta)
    bias = bias.reshape(Cout, 1).astype(jnp.float32)

    # ---- tiling ----
    T, halo = _pick_tiles(lo_len, Wp)
    n_tiles = pl.cdiv(lo_len, T)
    Ly = n_tiles * T                           # flat output length (tile-padded)
    Lx = Ly + halo                             # flat input length (+ tail halo)
    stride = T // halo                         # halo-blocks per output tile

    # ---- zero-pad + flatten input (bf16 stream, NO im2col slab) ----
    x_pad = jnp.pad(x_nchw, ((0, 0), (0, 0), (1, 1), (1, 1)))           # (N,Cin,H+2,Wp)
    x_flat = x_pad.reshape(N, Cin, (H + 2) * Wp).astype(jnp.bfloat16)
    x_flat = jnp.pad(x_flat, ((0, 0), (0, 0), (0, Lx - (H + 2) * Wp)))  # (N,Cin,Lx)

    grid = (N, n_tiles)
    kernel = functools.partial(_conv_bn_relu_kernel, wp=Wp)

    cost = pl.CostEstimate(
        flops=2 * N * Cout * 9 * Cin * Ly,
        transcendentals=0,
        bytes_accessed=N * (Cin * Ly * 2 + Cin * halo * n_tiles * 2
                            + Cout * Ly * 4) + (w9.size + bias.size) * 4)

    out = pl.pallas_call(
        kernel,
        out_shape=jax.ShapeDtypeStruct((N, Cout, Ly), jnp.float32),
        grid_spec=pltpu.PrefetchScalarGridSpec(
            num_scalar_prefetch=0,
            grid=grid,
            in_specs=[
                # current tile
                pl.BlockSpec((1, Cin, T), lambda n, t: (n, 0, t)),
                # halo: first `halo` lanes of the next tile (same array, narrow block)
                pl.BlockSpec((1, Cin, halo),
                             lambda n, t: (n, 0, (t + 1) * stride)),
                # resident folded weights / bias
                pl.BlockSpec((9, Cout, Cin), lambda n, t: (0, 0, 0)),
                pl.BlockSpec((Cout, 1), lambda n, t: (0, 0)),
            ],
            out_specs=pl.BlockSpec((1, Cout, T), lambda n, t: (n, 0, t)),
        ),
        compiler_params=pltpu.CompilerParams(
            dimension_semantics=("parallel", "parallel"),
            vmem_limit_bytes=32 * 1024 * 1024),
        cost_estimate=cost,
    )(x_flat, x_flat, w9, bias)

    # Crop the 2 garbage pad columns per row (and tile-pad tail); already NCHW.
    out = out[:, :, :lo_len].reshape(N, Cout, H, Wp)[:, :, :, :W]
    return out


def _reference(x_nchw, weight, conv_bias, gamma, beta, mean, var, eps=1e-5):
    """Pure-JAX reference (lax conv) for correctness check."""
    y = jax.lax.conv_general_dilated(
        x_nchw, weight, window_strides=(1, 1), padding=((1, 1), (1, 1)),
        dimension_numbers=("NCHW", "OIHW", "NCHW"))
    y = y + conv_bias[None, :, None, None]
    y = (y - mean[None, :, None, None]) / jnp.sqrt(var[None, :, None, None] + eps)
    y = y * gamma[None, :, None, None] + beta[None, :, None, None]
    return jnp.maximum(y, 0.0)


if __name__ == "__main__":
    # Small shapes consistent with the module's (conv => BN => ReLU) input block.
    N, Cin, Cout, H, W = 2, 4, 8, 16, 16

    key = jax.random.PRNGKey(0)
    kx, kw, kb, kg, kbeta, km, kv = jax.random.split(key, 7)

    x = jax.random.normal(kx, (N, Cin, H, W), dtype=jnp.float32)
    weight = jax.random.normal(kw, (Cout, Cin, 3, 3), dtype=jnp.float32) * 0.1
    conv_bias = jax.random.normal(kb, (Cout,), dtype=jnp.float32) * 0.1
    # BatchNorm parameters (deterministic, inference-style running stats).
    gamma = 1.0 + 0.1 * jax.random.normal(kg, (Cout,), dtype=jnp.float32)
    beta = 0.1 * jax.random.normal(kbeta, (Cout,), dtype=jnp.float32)
    running_mean = 0.1 * jax.random.normal(km, (Cout,), dtype=jnp.float32)
    running_var = 1.0 + 0.1 * jax.random.uniform(kv, (Cout,), dtype=jnp.float32)

    out = inf_input_forward(x, weight, conv_bias, gamma, beta,
                            running_mean, running_var)
    out = jax.block_until_ready(out)

    ref = _reference(x, weight, conv_bias, gamma, beta, running_mean, running_var)
    assert out.shape == (N, Cout, H, W)
    # bf16 activation stream + f32 accumulate: loosened tolerance vs f32 reference.
    assert jnp.allclose(out, ref, atol=3e-2, rtol=3e-2), "mismatch vs reference"

    print("KERNEL_OK")
</pallas_src>

<mosaic_0001>
module attributes {stable_mosaic.version = 11 : i64} {
  func.func @_conv_bn_relu_kernel(%arg0: i32, %arg1: i32, %arg2: memref<1x4x384xbf16, #tpu.memory_space<vmem>>, %arg3: memref<1x4x128xbf16, #tpu.memory_space<vmem>>, %arg4: memref<9x8x4xf32, #tpu.memory_space<vmem>>, %arg5: memref<8x1xf32, #tpu.memory_space<vmem>>, %arg6: memref<1x8x384xf32, #tpu.memory_space<vmem>>) attributes {dimension_semantics = [#tpu.dimension_semantics<parallel>, #tpu.dimension_semantics<parallel>], iteration_bounds = array<i64: 2, 1>, scalar_prefetch = 0 : i64, scratch_operands = 0 : i64, tpu.core_type = #tpu.core_type<tc>, window_params = [{transform_indices = @transform_0, window_bounds = array<i64: 1, 4, 384>}, {transform_indices = @transform_1, window_bounds = array<i64: 1, 4, 128>}, {pipeline_mode = #tpu.pipeline_mode<synchronous>, transform_indices = @transform_2, window_bounds = array<i64: 9, 8, 4>}, {pipeline_mode = #tpu.pipeline_mode<synchronous>, transform_indices = @transform_3, window_bounds = array<i64: 8, 1>}, {transform_indices = @transform_4, window_bounds = array<i64: 1, 8, 384>}]} {
    %c0 = arith.constant 0 : index
    %c0_0 = arith.constant 0 : index
    %c0_1 = arith.constant 0 : index
    %0 = vector.load %arg2[%c0, %c0_0, %c0_1] : memref<1x4x384xbf16, #tpu.memory_space<vmem>>, vector<1x4x384xbf16>
    %1 = vector.shape_cast %0 : vector<1x4x384xbf16> to vector<4x384xbf16>
    %2 = arith.extf %1 : vector<4x384xbf16> to vector<4x384xf32>
    %c0_2 = arith.constant 0 : index
    %c0_3 = arith.constant 0 : index
    %c0_4 = arith.constant 0 : index
    %3 = vector.load %arg3[%c0_2, %c0_3, %c0_4] : memref<1x4x128xbf16, #tpu.memory_space<vmem>>, vector<1x4x128xbf16>
    %4 = vector.shape_cast %3 : vector<1x4x128xbf16> to vector<4x128xbf16>
    %5 = arith.extf %4 : vector<4x128xbf16> to vector<4x128xf32>
    %6 = tpu.concatenate %2, %5 in 1 : vector<4x384xf32>, vector<4x128xf32> -> vector<4x512xf32>
    %cst = arith.constant 0.000000e+00 : f32
    %7 = vector.broadcast %cst : f32 to vector<8x384xf32>
    %8 = vector.extract_strided_slice %6 {offsets = [0, 0], sizes = [4, 384], strides = [1, 1]} : vector<4x512xf32> to vector<4x384xf32>
    %c0_5 = arith.constant 0 : index
    %c0_6 = arith.constant 0 : index
    %c0_7 = arith.constant 0 : index
    %9 = vector.load %arg4[%c0_5, %c0_6, %c0_7] : memref<9x8x4xf32, #tpu.memory_space<vmem>>, vector<1x8x4xf32>
    %10 = vector.shape_cast %9 : vector<1x8x4xf32> to vector<8x4xf32>
    %cst_8 = arith.constant dense<0.000000e+00> : vector<8x384xf32>
    %11 = tpu.matmul %10, %8, %cst_8 {dimension_numbers = #tpu.dot_dimension_numbers<[1], [0], [0], [1], [0, 0, 1, 1], [], []>} : vector<8x4xf32>, vector<4x384xf32>, vector<8x384xf32> -> vector<8x384xf32>
    %12 = arith.addf %7, %11 : vector<8x384xf32>
    %13 = vector.extract_strided_slice %6 {offsets = [0, 1], sizes = [4, 384], strides = [1, 1]} : vector<4x512xf32> to vector<4x384xf32>
    %c1 = arith.constant 1 : index
    %c0_9 = arith.constant 0 : index
    %c0_10 = arith.constant 0 : index
    %14 = vector.load %arg4[%c1, %c0_9, %c0_10] : memref<9x8x4xf32, #tpu.memory_space<vmem>>, vector<1x8x4xf32>
    %15 = vector.shape_cast %14 : vector<1x8x4xf32> to vector<8x4xf32>
    %cst_11 = arith.constant dense<0.000000e+00> : vector<8x384xf32>
    %16 = tpu.matmul %15, %13, %cst_11 {dimension_numbers = #tpu.dot_dimension_numbers<[1], [0], [0], [1], [0, 0, 1, 1], [], []>} : vector<8x4xf32>, vector<4x384xf32>, vector<8x384xf32> -> vector<8x384xf32>
    %17 = arith.addf %12, %16 : vector<8x384xf32>
    %18 = vector.extract_strided_slice %6 {offsets = [0, 2], sizes = [4, 384], strides = [1, 1]} : vector<4x512xf32> to vector<4x384xf32>
    %c2 = arith.constant 2 : index
    %c0_12 = arith.constant 0 : index
    %c0_13 = arith.constant 0 : index
    %19 = vector.load %arg4[%c2, %c0_12, %c0_13] : memref<9x8x4xf32, #tpu.memory_space<vmem>>, vector<1x8x4xf32>
    %20 = vector.shape_cast %19 : vector<1x8x4xf32> to vector<8x4xf32>
    %cst_14 = arith.constant dense<0.000000e+00> : vector<8x384xf32>
    %21 = tpu.matmul %20, %18, %cst_14 {dimension_numbers = #tpu.dot_dimension_numbers<[1], [0], [0], [1], [0, 0, 1, 1], [], []>} : vector<8x4xf32>, vector<4x384xf32>, vector<8x384xf32> -> vector<8x384xf32>
    %22 = arith.addf %17, %21 : vector<8x384xf32>
    %23 = vector.extract_strided_slice %6 {offsets = [0, 18], sizes = [4, 384], strides = [1, 1]} : vector<4x512xf32> to vector<4x384xf32>
    %c3 = arith.constant 3 : index
    %c0_15 = arith.constant 0 : index
    %c0_16 = arith.constant 0 : index
    %24 = vector.load %arg4[%c3, %c0_15, %c0_16] : memref<9x8x4xf32, #tpu.memory_space<vmem>>, vector<1x8x4xf32>
    %25 = vector.shape_cast %24 : vector<1x8x4xf32> to vector<8x4xf32>
    %cst_17 = arith.constant dense<0.000000e+00> : vector<8x384xf32>
    %26 = tpu.matmul %25, %23, %cst_17 {dimension_numbers = #tpu.dot_dimension_numbers<[1], [0], [0], [1], [0, 0, 1, 1], [], []>} : vector<8x4xf32>, vector<4x384xf32>, vector<8x384xf32> -> vector<8x384xf32>
    %27 = arith.addf %22, %26 : vector<8x384xf32>
    %28 = vector.extract_strided_slice %6 {offsets = [0, 19], sizes = [4, 384], strides = [1, 1]} : vector<4x512xf32> to vector<4x384xf32>
    %c4 = arith.constant 4 : index
    %c0_18 = arith.constant 0 : index
    %c0_19 = arith.constant 0 : index
    %29 = vector.load %arg4[%c4, %c0_18, %c0_19] : memref<9x8x4xf32, #tpu.memory_space<vmem>>, vector<1x8x4xf32>
    %30 = vector.shape_cast %29 : vector<1x8x4xf32> to vector<8x4xf32>
    %cst_20 = arith.constant dense<0.000000e+00> : vector<8x384xf32>
    %31 = tpu.matmul %30, %28, %cst_20 {dimension_numbers = #tpu.dot_dimension_numbers<[1], [0], [0], [1], [0, 0, 1, 1], [], []>} : vector<8x4xf32>, vector<4x384xf32>, vector<8x384xf32> -> vector<8x384xf32>
    %32 = arith.addf %27, %31 : vector<8x384xf32>
    %33 = vector.extract_strided_slice %6 {offsets = [0, 20], sizes = [4, 384], strides = [1, 1]} : vector<4x512xf32> to vector<4x384xf32>
    %c5 = arith.constant 5 : index
    %c0_21 = arith.constant 0 : index
    %c0_22 = arith.constant 0 : index
    %34 = vector.load %arg4[%c5, %c0_21, %c0_22] : memref<9x8x4xf32, #tpu.memory_space<vmem>>, vector<1x8x4xf32>
    %35 = vector.shape_cast %34 : vector<1x8x4xf32> to vector<8x4xf32>
    %cst_23 = arith.constant dense<0.000000e+00> : vector<8x384xf32>
    %36 = tpu.matmul %35, %33, %cst_23 {dimension_numbers = #tpu.dot_dimension_numbers<[1], [0], [0], [1], [0, 0, 1, 1], [], []>} : vector<8x4xf32>, vector<4x384xf32>, vector<8x384xf32> -> vector<8x384xf32>
    %37 = arith.addf %32, %36 : vector<8x384xf32>
    %38 = vector.extract_strided_slice %6 {offsets = [0, 36], sizes = [4, 384], strides = [1, 1]} : vector<4x512xf32> to vector<4x384xf32>
    %c6 = arith.constant 6 : index
    %c0_24 = arith.constant 0 : index
    %c0_25 = arith.constant 0 : index
    %39 = vector.load %arg4[%c6, %c0_24, %c0_25] : memref<9x8x4xf32, #tpu.memory_space<vmem>>, vector<1x8x4xf32>
    %40 = vector.shape_cast %39 : vector<1x8x4xf32> to vector<8x4xf32>
    %cst_26 = arith.constant dense<0.000000e+00> : vector<8x384xf32>
    %41 = tpu.matmul %40, %38, %cst_26 {dimension_numbers = #tpu.dot_dimension_numbers<[1], [0], [0], [1], [0, 0, 1, 1], [], []>} : vector<8x4xf32>, vector<4x384xf32>, vector<8x384xf32> -> vector<8x384xf32>
    %42 = arith.addf %37, %41 : vector<8x384xf32>
    %43 = vector.extract_strided_slice %6 {offsets = [0, 37], sizes = [4, 384], strides = [1, 1]} : vector<4x512xf32> to vector<4x384xf32>
    %c7 = arith.constant 7 : index
    %c0_27 = arith.constant 0 : index
    %c0_28 = arith.constant 0 : index
    %44 = vector.load %arg4[%c7, %c0_27, %c0_28] : memref<9x8x4xf32, #tpu.memory_space<vmem>>, vector<1x8x4xf32>
    %45 = vector.shape_cast %44 : vector<1x8x4xf32> to vector<8x4xf32>
    %cst_29 = arith.constant dense<0.000000e+00> : vector<8x384xf32>
    %46 = tpu.matmul %45, %43, %cst_29 {dimension_numbers = #tpu.dot_dimension_numbers<[1], [0], [0], [1], [0, 0, 1, 1], [], []>} : vector<8x4xf32>, vector<4x384xf32>, vector<8x384xf32> -> vector<8x384xf32>
    %47 = arith.addf %42, %46 : vector<8x384xf32>
    %48 = vector.extract_strided_slice %6 {offsets = [0, 38], sizes = [4, 384], strides = [1, 1]} : vector<4x512xf32> to vector<4x384xf32>
    %c8 = arith.constant 8 : index
    %c0_30 = arith.constant 0 : index
    %c0_31 = arith.constant 0 : index
    %49 = vector.load %arg4[%c8, %c0_30, %c0_31] : memref<9x8x4xf32, #tpu.memory_space<vmem>>, vector<1x8x4xf32>
    %50 = vector.shape_cast %49 : vector<1x8x4xf32> to vector<8x4xf32>
    %cst_32 = arith.constant dense<0.000000e+00> : vector<8x384xf32>
    %51 = tpu.matmul %50, %48, %cst_32 {dimension_numbers = #tpu.dot_dimension_numbers<[1], [0], [0], [1], [0, 0, 1, 1], [], []>} : vector<8x4xf32>, vector<4x384xf32>, vector<8x384xf32> -> vector<8x384xf32>
    %52 = arith.addf %47, %51 : vector<8x384xf32>
    %c0_33 = arith.constant 0 : index
    %c0_34 = arith.constant 0 : index
    %53 = vector.load %arg5[%c0_33, %c0_34] : memref<8x1xf32, #tpu.memory_space<vmem>>, vector<8x1xf32>
    %54 = vector.broadcast %53 : vector<8x1xf32> to vector<8x384xf32>
    %55 = arith.addf %52, %54 : vector<8x384xf32>
    %cst_35 = arith.constant 0.000000e+00 : f32
    %56 = vector.broadcast %cst_35 : f32 to vector<8x384xf32>
    %57 = arith.maximumf %55, %56 : vector<8x384xf32>
    %c0_36 = arith.constant 0 : index
    %c0_37 = arith.constant 0 : index
    %c0_38 = arith.constant 0 : index
    %58 = vector.load %arg6[%c0_36, %c0_37, %c0_38] : memref<1x8x384xf32, #tpu.memory_space<vmem>>, vector<1x8x384xf32>
    %59 = vector.shape_cast %58 : vector<1x8x384xf32> to vector<8x384xf32>
    %60 = vector.shape_cast %57 : vector<8x384xf32> to vector<1x8x384xf32>
    tpu.vector_store %arg6[%c0_36, %c0_37, %c0_38], %60 {strides = array<i32>} : memref<1x8x384xf32, #tpu.memory_space<vmem>>, vector<1x8x384xf32>,
    return
  }
  func.func @transform_0(%arg0: i32, %arg1: i32) -> (i32, i32, i32) {
    %c0_i32 = arith.constant 0 : i32
    %c0_i32_0 = arith.constant 0 : i32
    return %arg0, %c0_i32, %arg1 : i32, i32, i32
  }
  func.func @transform_1(%arg0: i32, %arg1: i32) -> (i32, i32, i32) {
    %c1_i32 = arith.constant 1 : i32
    %0 = arith.addi %arg1, %c1_i32 : i32
    %c3_i32 = arith.constant 3 : i32
    %1 = arith.muli %0, %c3_i32 : i32
    %c0_i32 = arith.constant 0 : i32
    %c0_i32_0 = arith.constant 0 : i32
    return %arg0, %c0_i32, %1 : i32, i32, i32
  }
  func.func @transform_2(%arg0: i32, %arg1: i32) -> (i32, i32, i32) {
    %c0_i32 = arith.constant 0 : i32
    %c0_i32_0 = arith.constant 0 : i32
    %c0_i32_1 = arith.constant 0 : i32
    %c0_i32_2 = arith.constant 0 : i32
    return %c0_i32, %c0_i32_0, %c0_i32_1 : i32, i32, i32
  }
  func.func @transform_3(%arg0: i32, %arg1: i32) -> (i32, i32) {
    %c0_i32 = arith.constant 0 : i32
    %c0_i32_0 = arith.constant 0 : i32
    %c0_i32_1 = arith.constant 0 : i32
    return %c0_i32, %c0_i32_0 : i32, i32
  }
  func.func @transform_4(%arg0: i32, %arg1: i32) -> (i32, i32, i32) {
    %c0_i32 = arith.constant 0 : i32
    %c0_i32_0 = arith.constant 0 : i32
    return %arg0, %c0_i32, %arg1 : i32, i32, i32
  }
}

</mosaic_0001>

<llo_original>
// kernel: inf_input_forward.1
$region0: #{inf_input_forward.1}
  #allocation0 [shape = 'u32[]', space=smem, size = 0x4, offset = 0x4, fixed_abs, tag = 'smem constant byte address 0x4 - core index']
  #allocation1 [shape = 'u32[144,128]{1,0:T(1,128)}', space=vmem, size = 0x12000, scoped, tag = 'internal scratch']
  %s0 = inlined_call_operand.vmem [shape: bf16[2,4,512], index: 0, kind: input, shape index: {}, may-alias: {0,1}]
  %s1 = inlined_call_operand.vmem [shape: bf16[2,4,512], index: 1, kind: input, shape index: {}, may-alias: {0,1}]
  %s2 = inlined_call_operand.vmem [shape: f32[9,8,4], index: 2, kind: input, shape index: {}]
  %s3 = inlined_call_operand.vmem [shape: f32[8,1], index: 3, kind: input, shape index: {}]
  %s4 = inlined_call_operand.vmem [shape: f32[2,8,384], index: 4, kind: output, shape index: {}]
  %s5 = sld [smem:[#allocation0]]
  $region49: #{inf_input_forward.1} parent=0
    _
  %s7 = ssub.s32 1, %s5
  %s8 = scalar_select 0, %s7, %s5
  loop: start=0, step=1, limit=4
  $region2: #{inf_input_forward.1} parent=0 // loop_pre_header
    _
  $region3: #{inf_input_forward.1} parent=0 // loop_header
    %s10 = sphi 0, %s14
    %p11 = scmp.ge.s32.totalorder %s10, 4
    %s17 = sphi 0, %s29
    %s18 = sphi 0, %s25
    %s19 = sphi 0, %s17
    %s20 = sphi 0, %s18
    %s21 = sphi 0, %s19
    %s22 = sphi 0, %s20
    %s34 = sphi 0, %s36
    %s37 = sphi 0, %s34
    %s38 = sphi 0, %s37
    %s54 = sphi 0, %s38
    %s66 = sphi 0, %s68
    %s69 = sphi 0, %s66
    %s70 = sphi 0, %s69
    %s86 = sphi 0, %s70
    %s90 = sphi 0, %s90
    %s92 = sphi 0, %s90
    %s93 = sphi 0, %s92
    %s107 = sphi 0, %s93
    %s111 = sphi 0, %s111
    %s113 = sphi 0, %s111
    %s114 = sphi 0, %s113
    %s128 = sphi 0, %s114
    %s136 = sphi 0, %s138
    %s139 = sphi 0, %s136
    %s140 = sphi 0, %s139
    %s156 = sphi 0, %s140
  $region4: #{inf_input_forward.1} parent=0 // loop_header_branch
    %13 = sbr.rel (%p11) target = $region8
  $region5: #{inf_input_forward.1} parent=0 // loop_body
    %s15 = ssub.s32 %s10, 1
    %s16 = ssub.s32 %s10, 2
    %s23 = sadd.s32 1, %s18
    %p24 = scmp.ge.s32.totalorder %s23, 1
    %s25 = scalar_select %p24, 0, %s23
    %s26 = sadd.s32 1, %s17
    %s27 = scalar_select %p24, %s26, %s17
    %p28 = scmp.ge.s32.totalorder %s27, 2
    %s29 = scalar_select %p28, 0, %s27
    %s30 = ssub.s32 %s17, %s29
    %s31 = ssub.s32 %s18, %s25
    %s32 = sor.u32 %s30, %s31
    %p33 = scmp.eq.s32.totalorder %s32, 0
    %s35 = sadd.s32 %s34, 1
    %s36 = scalar_select %p33, %s34, %s35
    %p39 = pneg %p33
    %p40 = scmp.eq.s32.totalorder %s10, 1
    %p41 = por %p39, %p40
    %p42 = scmp.ne.s32.totalorder %s34, %s37
    %p43 = scmp.eq.s32.totalorder %s10, 0
    %p44 = por %p42, %p43
    %p45 = scmp.ne.s32.totalorder %s34, %s37
    %p46 = scmp.eq.s32.totalorder %s15, 1
    %p47 = por %p45, %p46
    %p48 = scmp.ne.s32.totalorder %s37, %s38
    %p49 = scmp.eq.s32.totalorder %s15, 0
    %p50 = por %p48, %p49
    %p51 = scmp.ne.s32.totalorder %s37, %s38
    %p52 = scmp.eq.s32.totalorder %s16, 1
    %p53 = por %p51, %p52
    %p55 = scmp.ne.s32.totalorder %s38, %s54
    %p56 = scmp.eq.s32.totalorder %s16, 0
    %p57 = por %p55, %p56
    %s58 = sadd.s32 %s18, 1
    %s59 = smul.u32 %s58, 3
    %s60 = sadd.s32 %s25, 1
    %s61 = smul.u32 %s60, 3
    %s62 = ssub.s32 %s17, %s29
    %s63 = ssub.s32 %s59, %s61
    %s64 = sor.u32 %s62, %s63
    %p65 = scmp.eq.s32.totalorder %s64, 0
    %s67 = sadd.s32 %s66, 1
    %s68 = scalar_select %p65, %s66, %s67
    %p71 = pneg %p65
    %p72 = scmp.eq.s32.totalorder %s10, 1
    %p73 = por %p71, %p72
    %p74 = scmp.ne.s32.totalorder %s66, %s69
    %p75 = scmp.eq.s32.totalorder %s10, 0
    %p76 = por %p74, %p75
    %p77 = scmp.ne.s32.totalorder %s66, %s69
    %p78 = scmp.eq.s32.totalorder %s15, 1
    %p79 = por %p77, %p78
    %p80 = scmp.ne.s32.totalorder %s69, %s70
    %p81 = scmp.eq.s32.totalorder %s15, 0
    %p82 = por %p80, %p81
    %p83 = scmp.ne.s32.totalorder %s69, %s70
    %p84 = scmp.eq.s32.totalorder %s16, 1
    %p85 = por %p83, %p84
    %p87 = scmp.ne.s32.totalorder %s70, %s86
    %p88 = scmp.eq.s32.totalorder %s16, 0
    %p89 = por %p87, %p88
    %s91 = sadd.s32 %s90, 1
    %p94 = scmp.eq.s32.totalorder %s10, 1
    %p95 = scmp.ne.s32.totalorder %s90, %s92
    %p96 = scmp.eq.s32.totalorder %s10, 0
    %p97 = por %p95, %p96
    %p98 = scmp.ne.s32.totalorder %s90, %s92
    %p99 = scmp.eq.s32.totalorder %s15, 1
    %p100 = por %p98, %p99
    %p101 = scmp.ne.s32.totalorder %s92, %s93
    %p102 = scmp.eq.s32.totalorder %s15, 0
    %p103 = por %p101, %p102
    %p104 = scmp.ne.s32.totalorder %s92, %s93
    %p105 = scmp.eq.s32.totalorder %s16, 1
    %p106 = por %p104, %p105
    %p108 = scmp.ne.s32.totalorder %s93, %s107
    %p109 = scmp.eq.s32.totalorder %s16, 0
    %p110 = por %p108, %p109
    %s112 = sadd.s32 %s111, 1
    %p115 = scmp.eq.s32.totalorder %s10, 1
    %p116 = scmp.ne.s32.totalorder %s111, %s113
    %p117 = scmp.eq.s32.totalorder %s10, 0
    %p118 = por %p116, %p117
    %p119 = scmp.ne.s32.totalorder %s111, %s113
    %p120 = scmp.eq.s32.totalorder %s15, 1
    %p121 = por %p119, %p120
    %p122 = scmp.ne.s32.totalorder %s113, %s114
    %p123 = scmp.eq.s32.totalorder %s15, 0
    %p124 = por %p122, %p123
    %p125 = scmp.ne.s32.totalorder %s113, %s114
    %p126 = scmp.eq.s32.totalorder %s16, 1
    %p127 = por %p125, %p126
    %p129 = scmp.ne.s32.totalorder %s114, %s128
    %p130 = scmp.eq.s32.totalorder %s16, 0
    %p131 = por %p129, %p130
    %s132 = ssub.s32 %s17, %s29
    %s133 = ssub.s32 %s18, %s25
    %s134 = sor.u32 %s132, %s133
    %p135 = scmp.eq.s32.totalorder %s134, 0
    %s137 = sadd.s32 %s136, 1
    %s138 = scalar_select %p135, %s136, %s137
    %p141 = pneg %p135
    %p142 = scmp.eq.s32.totalorder %s10, 1
    %p143 = por %p141, %p142
    %p144 = scmp.ne.s32.totalorder %s136, %s139
    %p145 = scmp.eq.s32.totalorder %s10, 0
    %p146 = por %p144, %p145
    %p147 = scmp.ne.s32.totalorder %s136, %s139
    %p148 = scmp.eq.s32.totalorder %s15, 1
    %p149 = por %p147, %p148
    %p150 = scmp.ne.s32.totalorder %s139, %s140
    %p151 = scmp.eq.s32.totalorder %s15, 0
    %p152 = por %p150, %p151
    %p153 = scmp.ne.s32.totalorder %s139, %s140
    %p154 = scmp.eq.s32.totalorder %s16, 1
    %p155 = por %p153, %p154
    %p157 = scmp.ne.s32.totalorder %s140, %s156
    %p158 = scmp.eq.s32.totalorder %s16, 0
    %p159 = por %p157, %p158
    %p160 = scmp.le.s32.totalorder 1, %s10
    %p161 = scmp.lt.s32.totalorder %s10, 3
    %p162 = pnand %p160, %p161
    %p163 = pneg %p162
    // Predicated region
    $region9: #{inf_input_forward.1} parent=5 // pred_check
      _
    $region10: #{inf_input_forward.1} parent=5 // pred_check_branch
      %165 = sbr.rel (%p162) target = $region12
    $region11: #{inf_input_forward.1} parent=5 // pred_region
      %s166 = ssub.s32 %s10, 1
      // Predicated region
      $region13: #{inf_input_forward.1} parent=11 // pred_check
        %p167 = pneg %p103
      $region14: #{inf_input_forward.1} parent=11 // pred_check_branch
        %169 = sbr.rel (%p167) target = $region16
      $region15: #{inf_input_forward.1} parent=11 // pred_region
        _
      $region16: #{inf_input_forward.1} parent=11 // pred_fallthru
        _
      // Predicated region
      $region17: #{inf_input_forward.1} parent=11 // pred_check
        %p170 = pneg %p124
      $region18: #{inf_input_forward.1} parent=11 // pred_check_branch
        %172 = sbr.rel (%p170) target = $region20
      $region19: #{inf_input_forward.1} parent=11 // pred_region
        _
      $region20: #{inf_input_forward.1} parent=11 // pred_fallthru
        _
    $region12: #{inf_input_forward.1} parent=5 // pred_fallthru
      _
    %p173 = scmp.lt.s32.totalorder %s10, 2
    // Predicated region
    $region21: #{inf_input_forward.1} parent=5 // pred_check
      %p174 = pneg %p173
    $region22: #{inf_input_forward.1} parent=5 // pred_check_branch
      %176 = sbr.rel (%p174) target = $region24
    $region23: #{inf_input_forward.1} parent=5 // pred_region
      // Predicated region
      $region25: #{inf_input_forward.1} parent=23 // pred_check
        %p177 = pneg %p44
      $region26: #{inf_input_forward.1} parent=23 // pred_check_branch
        %179 = sbr.rel (%p177) target = $region28
      $region27: #{inf_input_forward.1} parent=23 // pred_region
        %s180 = smul.u32 3, %s18
        %s181 = ssub.s32 4, %s180
        %p182 = scmp.lt.s32.totalorder %s181, 3
        %s183 = scalar_select %p182, %s181, 3
        %s184 = smul.u32 32, %s183
        %p185 = scmp.lt.s32.totalorder %s17, 1
        %s186 = scalar_select %p185, %s17, 1
        %p187 = scmp.lt.s32.totalorder %s180, 3
        %s188 = scalar_select %p187, %s180, 3
        %s189 = smul.addr %s186, 4
        %s190 = sadd.s32 %s188, %s189
        %s191 = smul.addr %s190, 2
        %s192 = scalar_lea.vmem %s0, %s191
        %s193 = smul.u32 3, %s18
        %s194 = ssub.s32 4, %s193
        %p195 = scmp.lt.s32.totalorder %s194, 3
        %s196 = scalar_select %p195, %s194, 3
        %s197 = smul.u32 32, %s196
      $region28: #{inf_input_forward.1} parent=23 // pred_fallthru
        _
      // Predicated region
      $region29: #{inf_input_forward.1} parent=23 // pred_check
        %p198 = pneg %p76
      $region30: #{inf_input_forward.1} parent=23 // pred_check_branch
        %200 = sbr.rel (%p198) target = $region32
      $region31: #{inf_input_forward.1} parent=23 // pred_region
        %s201 = sadd.s32 %s18, 1
        %s202 = smul.u32 %s201, 3
        %p203 = scmp.lt.s32.totalorder %s17, 1
        %s204 = scalar_select %p203, %s17, 1
        %p205 = scmp.lt.s32.totalorder %s202, 3
        %s206 = scalar_select %p205, %s202, 3
        %s207 = smul.addr %s204, 4
        %s208 = sadd.s32 %s206, %s207
        %s209 = smul.addr %s208, 2
        %s210 = scalar_lea.vmem %s1, %s209
        %s211 = sadd.s32 %s18, 1
        %s212 = smul.u32 %s211, 3
      $region32: #{inf_input_forward.1} parent=23 // pred_fallthru
        _
    $region24: #{inf_input_forward.1} parent=5 // pred_fallthru
      _
    %p213 = scmp.le.s32.totalorder 1, %s10
    %p214 = scmp.lt.s32.totalorder %s10, 3
    %p215 = pnand %p213, %p214
    %p216 = pneg %p215
    // Predicated region
    $region33: #{inf_input_forward.1} parent=5 // pred_check
      _
    $region34: #{inf_input_forward.1} parent=5 // pred_check_branch
      %218 = sbr.rel (%p215) target = $region36
    $region35: #{inf_input_forward.1} parent=5 // pred_region
      %s219 = ssub.s32 %s10, 1
      %s220 = smul.u32 3, %s20
      %s221 = ssub.s32 4, %s220
      %p222 = scmp.lt.s32.totalorder %s221, 3
      %s223 = scalar_select %p222, %s221, 3
      %s224 = smul.u32 32, %s223
      %p225 = scmp.lt.s32.totalorder %s19, 1
      %s226 = scalar_select %p225, %s19, 1
      %p227 = scmp.lt.s32.totalorder %s220, 3
      %s228 = scalar_select %p227, %s220, 3
      %s229 = smul.addr %s226, 4
      %s230 = sadd.s32 %s228, %s229
      %s231 = smul.addr %s230, 2
      %s232 = scalar_lea.vmem %s0, %s231
      %p233 = pneg %p50
      %p234 = pneg %p47
      %s235 = sadd.s32 %s20, 1
      %s236 = smul.u32 %s235, 3
      %p237 = scmp.lt.s32.totalorder %s19, 1
      %s238 = scalar_select %p237, %s19, 1
      %p239 = scmp.lt.s32.totalorder %s236, 3
      %s240 = scalar_select %p239, %s236, 3
      %s241 = smul.addr %s238, 4
      %s242 = sadd.s32 %s240, %s241
      %s243 = smul.addr %s242, 2
      %s244 = scalar_lea.vmem %s1, %s243
      %p245 = pneg %p82
      %p246 = pneg %p79
      %p247 = pneg %p103
      %p248 = pneg %p100
      %p249 = pneg %p124
      %p250 = pneg %p121
      %p251 = pneg %p152
      %p252 = pneg %p149
      %s253 = smul.u32 3, %s20
      %p254 = scmp.lt.s32.totalorder %s19, 1
      %s255 = scalar_select %p254, %s19, 1
      %p256 = scmp.lt.s32.totalorder %s253, 2
      %s257 = scalar_select %p256, %s253, 2
      %s258 = smul.addr %s255, 3
      %s259 = sadd.s32 %s257, %s258
      %s260 = smul.addr %s259, 8
      %s261 = scalar_lea.vmem %s4, %s260
      %s262 = smul.u32 3, %s20
      %s263 = ssub.s32 4, %s262
      %p264 = scmp.lt.s32.totalorder %s263, 3
      %s265 = scalar_select %p264, %s263, 3
      %s266 = smul.u32 32, %s265
      %p267 = scmp.lt.s32.totalorder %s19, 1
      %s268 = scalar_select %p267, %s19, 1
      %p269 = scmp.lt.s32.totalorder %s262, 3
      %s270 = scalar_select %p269, %s262, 3
      %s271 = smul.addr %s268, 4
      %s272 = sadd.s32 %s270, %s271
      %s273 = smul.addr %s272, 2
      %s274 = scalar_lea.vmem %s0, %s273
      %s275 = smul.u32 3, %s20
      %s276 = ssub.s32 4, %s275
      %p277 = scmp.lt.s32.totalorder %s276, 3
      %s278 = scalar_select %p277, %s276, 3
      %s279 = smul.u32 32, %s278
      %s280 = sadd.s32 %s20, 1
      %s281 = smul.u32 %s280, 3
      %p282 = scmp.lt.s32.totalorder %s19, 1
      %s283 = scalar_select %p282, %s19, 1
      %p284 = scmp.lt.s32.totalorder %s281, 3
      %s285 = scalar_select %p284, %s281, 3
      %s286 = smul.addr %s283, 4
      %s287 = sadd.s32 %s285, %s286
      %s288 = smul.addr %s287, 2
      %s289 = scalar_lea.vmem %s1, %s288
      %s290 = sadd.s32 %s20, 1
      %s291 = smul.u32 %s290, 3
      %s292 = smul.u32 3, %s20
      %p293 = scmp.lt.s32.totalorder %s19, 1
      %s294 = scalar_select %p293, %s19, 1
      %p295 = scmp.lt.s32.totalorder %s292, 2
      %s296 = scalar_select %p295, %s292, 2
      %s297 = smul.addr %s294, 3
      %s298 = sadd.s32 %s296, %s297
      %s299 = smul.addr %s298, 8
      %s300 = scalar_lea.vmem %s4, %s299
      %s301 = smul.u32 3, %s20
      %v302 = vld [vmem:[%s274] sm:$0x3f]
      %v303 = vunpack.c.l.bf16 %v302
      %v304 = vunpack.c.h.bf16 %v302
      %v305 = vld [vmem:[%s289] sm:$0x3]
      %v306 = vunpack.c.l.bf16 %v305
      %v309 = vcombine.high %v303, %v303
      %v310 = vld [vmem:[%s2] sm:$0xff]
      %s311 = scalar_lea.vmem %s2, 8
      %v312 = vld [vmem:[%s311] sm:$0xff]
      %314 = vrot.lane.b32.xlu0 %v303, 127
      %v315 = vpop.permute.xlu0 %314
      %316 = vrot.lane.b32.xlu0 %v309, 127
      %v317 = vpop.permute.xlu0 %316
      %318 = vrot.lane.b32.xlu0 %v304, 127
      %v319 = vpop.permute.xlu0 %318
      %320 = vrot.lane.b32.xlu0 %v306, 127
      %v321 = vpop.permute.xlu0 %320
      %vm322 = vcmask 1039360
      %v323 = vsel %vm322, %v315, %v317
      %v324 = vsel %vm322, %v317, %v319
      %v325 = vsel %vm322, %v319, %v321
      %vm326 = vcmask 31744
      %v328 = vsel %vm326, %v312, 0
      %vm330 = vcmask 1043456
      %v331 = vsel %vm330, %v323, 0
      %v333 = vsel %vm330, %v324, 0
      %v335 = vsel %vm330, %v325, 0
      %337 = vmatprep.subr.mxu0 %v333
      %338 = vmatpush1.msra.mxu0 %v331
      %339 = vmatprep.subr.mxu0 0.0
      %340 = vmatpush1.msra.mxu0 0.0
      %341 = vmatprep.subr.mxu0 0.0
      %342 = vmatpush1.msra.mxu0 0.0
      %343 = vmatprep.subr.mxu0 0.0
      %344 = vmatpush1.msra.mxu0 0.0
      %345 = vmatprep.subr.mxu0 0.0
      %346 = vmatpush1.msra.mxu0 0.0
      %347 = vmatprep.subr.mxu0 0.0
      %348 = vmatpush1.msra.mxu0 0.0
      %349 = vmatprep.subr.mxu0 0.0
      %350 = vmatpush1.msra.mxu0 0.0
      %351 = vmatprep.subr.mxu0 0.0
      %352 = vmatpush1.msra.mxu0 0.0
      %353 = vmatprep.subr.mxu0 0.0
      %354 = vmatpush1.msra.mxu0 0.0
      %355 = vmatprep.subr.mxu0 0.0
      %356 = vmatpush1.msra.mxu0 0.0
      %357 = vmatprep.subr.mxu0 0.0
      %358 = vmatpush1.msra.mxu0 0.0
      %359 = vmatprep.subr.mxu0 0.0
      %360 = vmatpush1.msra.mxu0 0.0
      %361 = vmatprep.subr.mxu0 0.0
      %362 = vmatpush1.msra.mxu0 0.0
      %363 = vmatprep.subr.mxu0 0.0
      %364 = vmatpush1.msra.mxu0 0.0
      %365 = vmatprep.subr.mxu0 0.0
      %366 = vmatpush1.msra.mxu0 0.0
      %367 = vmatprep.subr.mxu0 0.0
      %368 = vmatpush1.msra.mxu0 0.0
      %369 = vmatprep.subr.mxu0 0.0
      %370 = vmatpush1.msra.mxu0 0.0
      %371 = vmatprep.subr.mxu0 0.0
      %372 = vmatpush1.msra.mxu0 0.0
      %373 = vmatprep.subr.mxu0 0.0
      %374 = vmatpush1.msra.mxu0 0.0
      %375 = vmatprep.subr.mxu0 0.0
      %376 = vmatpush1.msra.mxu0 0.0
      %377 = vmatprep.subr.mxu0 0.0
      %378 = vmatpush1.msra.mxu0 0.0
      %379 = vmatprep.subr.mxu0 0.0
      %380 = vmatpush1.msra.mxu0 0.0
      %381 = vmatprep.subr.mxu0 0.0
      %382 = vmatpush1.msra.mxu0 0.0
      %383 = vmatprep.subr.mxu0 0.0
      %384 = vmatpush1.msra.mxu0 0.0
      %385 = vmatprep.subr.mxu0 0.0
      %386 = vmatpush1.msra.mxu0 0.0
      %387 = vmatprep.subr.mxu0 0.0
      %388 = vmatpush1.msra.mxu0 0.0
      %389 = vmatprep.subr.mxu0 0.0
      %390 = vmatpush1.msra.mxu0 0.0
      %391 = vmatprep.subr.mxu0 0.0
      %392 = vmatpush1.msra.mxu0 0.0
      %393 = vmatprep.subr.mxu0 0.0
      %394 = vmatpush1.msra.mxu0 0.0
      %395 = vmatprep.subr.mxu0 0.0
      %396 = vmatpush1.msra.mxu0 0.0
      %397 = vmatprep.subr.mxu0 0.0
      %398 = vmatpush1.msra.mxu0 0.0
      %399 = vmatprep.subr.mxu0 0.0
      %400 = vmatpush1.msra.mxu0 0.0
      %401 = vmatprep.mubr.f32.mxu0 0.0
      %402 = vmatmul.mubr.f32.gmra.mrb[0].mxu0 %v328
      %v403 = vpop.f32.mrb[0].mxu0
      %v404 = vadd.f32 0.0, %v403
      %v405 = vpop.f32.mrb[0].mxu0
      %v406 = vadd.f32 0.0, %v405
      %407 = vdwg.mxu0
      %408 = vmatprep.subr.mxu0 0.0
      %409 = vmatpush1.msra.mxu0 %v335
      %410 = vmatprep.subr.mxu0 0.0
      %411 = vmatpush1.msra.mxu0 0.0
      %412 = vmatprep.subr.mxu0 0.0
      %413 = vmatpush1.msra.mxu0 0.0
      %414 = vmatprep.subr.mxu0 0.0
      %415 = vmatpush1.msra.mxu0 0.0
      %416 = vmatprep.subr.mxu0 0.0
      %417 = vmatpush1.msra.mxu0 0.0
      %418 = vmatprep.subr.mxu0 0.0
      %419 = vmatpush1.msra.mxu0 0.0
      %420 = vmatprep.subr.mxu0 0.0
      %421 = vmatpush1.msra.mxu0 0.0
      %422 = vmatprep.subr.mxu0 0.0
      %423 = vmatpush1.msra.mxu0 0.0
      %424 = vmatprep.subr.mxu0 0.0
      %425 = vmatpush1.msra.mxu0 0.0
      %426 = vmatprep.subr.mxu0 0.0
      %427 = vmatpush1.msra.mxu0 0.0
      %428 = vmatprep.subr.mxu0 0.0
      %429 = vmatpush1.msra.mxu0 0.0
      %430 = vmatprep.subr.mxu0 0.0
      %431 = vmatpush1.msra.mxu0 0.0
      %432 = vmatprep.subr.mxu0 0.0
      %433 = vmatpush1.msra.mxu0 0.0
      %434 = vmatprep.subr.mxu0 0.0
      %435 = vmatpush1.msra.mxu0 0.0
      %436 = vmatprep.subr.mxu0 0.0
      %437 = vmatpush1.msra.mxu0 0.0
      %438 = vmatprep.subr.mxu0 0.0
      %439 = vmatpush1.msra.mxu0 0.0
      %440 = vmatprep.subr.mxu0 0.0
      %441 = vmatpush1.msra.mxu0 0.0
      %442 = vmatprep.subr.mxu0 0.0
      %443 = vmatpush1.msra.mxu0 0.0
      %444 = vmatprep.subr.mxu0 0.0
      %445 = vmatpush1.msra.mxu0 0.0
      %446 = vmatprep.subr.mxu0 0.0
      %447 = vmatpush1.msra.mxu0 0.0
      %448 = vmatprep.subr.mxu0 0.0
      %449 = vmatpush1.msra.mxu0 0.0
      %450 = vmatprep.subr.mxu0 0.0
      %451 = vmatpush1.msra.mxu0 0.0
      %452 = vmatprep.subr.mxu0 0.0
      %453 = vmatpush1.msra.mxu0 0.0
      %454 = vmatprep.subr.mxu0 0.0
      %455 = vmatpush1.msra.mxu0 0.0
      %456 = vmatprep.subr.mxu0 0.0
      %457 = vmatpush1.msra.mxu0 0.0
      %458 = vmatprep.subr.mxu0 0.0
      %459 = vmatpush1.msra.mxu0 0.0
      %460 = vmatprep.subr.mxu0 0.0
      %461 = vmatpush1.msra.mxu0 0.0
      %462 = vmatprep.subr.mxu0 0.0
      %463 = vmatpush1.msra.mxu0 0.0
      %464 = vmatprep.subr.mxu0 0.0
      %465 = vmatpush1.msra.mxu0 0.0
      %466 = vmatprep.subr.mxu0 0.0
      %467 = vmatpush1.msra.mxu0 0.0
      %468 = vmatprep.subr.mxu0 0.0
      %469 = vmatpush1.msra.mxu0 0.0
      %470 = vmatprep.subr.mxu0 0.0
      %471 = vmatpush1.msra.mxu0 0.0
      %472 = vmatprep.mubr.f32.mxu0 0.0
      %473 = vmatmul.mubr.f32.gmra.mrb[0].mxu0 %v328
      %v474 = vpop.f32.mrb[0].mxu0
      %v475 = vadd.f32 0.0, %v474
      %v476 = vpop.f32.mrb[0].mxu0
      %477 = vdwg.mxu0
      %v479 = vsel %vm326, %v310, 0
      %v481 = vsel %vm330, %v303, 0
      %v483 = vsel %vm330, %v309, 0
      %v485 = vsel %vm330, %v304, 0
      %487 = vmatprep.subr.mxu0 %v483
      %488 = vmatpush1.msra.mxu0 %v481
      %489 = vmatprep.subr.mxu0 0.0
      %490 = vmatpush1.msra.mxu0 0.0
      %491 = vmatprep.subr.mxu0 0.0
      %492 = vmatpush1.msra.mxu0 0.0
      %493 = vmatprep.subr.mxu0 0.0
      %494 = vmatpush1.msra.mxu0 0.0
      %495 = vmatprep.subr.mxu0 0.0
      %496 = vmatpush1.msra.mxu0 0.0
      %497 = vmatprep.subr.mxu0 0.0
      %498 = vmatpush1.msra.mxu0 0.0
      %499 = vmatprep.subr.mxu0 0.0
      %500 = vmatpush1.msra.mxu0 0.0
      %501 = vmatprep.subr.mxu0 0.0
      %502 = vmatpush1.msra.mxu0 0.0
      %503 = vmatprep.subr.mxu0 0.0
      %504 = vmatpush1.msra.mxu0 0.0
      %505 = vmatprep.subr.mxu0 0.0
      %506 = vmatpush1.msra.mxu0 0.0
      %507 = vmatprep.subr.mxu0 0.0
      %508 = vmatpush1.msra.mxu0 0.0
      %509 = vmatprep.subr.mxu0 0.0
      %510 = vmatpush1.msra.mxu0 0.0
      %511 = vmatprep.subr.mxu0 0.0
      %512 = vmatpush1.msra.mxu0 0.0
      %513 = vmatprep.subr.mxu0 0.0
      %514 = vmatpush1.msra.mxu0 0.0
      %515 = vmatprep.subr.mxu0 0.0
      %516 = vmatpush1.msra.mxu0 0.0
      %517 = vmatprep.subr.mxu0 0.0
      %518 = vmatpush1.msra.mxu0 0.0
      %519 = vmatprep.subr.mxu0 0.0
      %520 = vmatpush1.msra.mxu0 0.0
      %521 = vmatprep.subr.mxu0 0.0
      %522 = vmatpush1.msra.mxu0 0.0
      %523 = vmatprep.subr.mxu0 0.0
      %524 = vmatpush1.msra.mxu0 0.0
      %525 = vmatprep.subr.mxu0 0.0
      %526 = vmatpush1.msra.mxu0 0.0
      %527 = vmatprep.subr.mxu0 0.0
      %528 = vmatpush1.msra.mxu0 0.0
      %529 = vmatprep.subr.mxu0 0.0
      %530 = vmatpush1.msra.mxu0 0.0
      %531 = vmatprep.subr.mxu0 0.0
      %532 = vmatpush1.msra.mxu0 0.0
      %533 = vmatprep.subr.mxu0 0.0
      %534 = vmatpush1.msra.mxu0 0.0
      %535 = vmatprep.subr.mxu0 0.0
      %536 = vmatpush1.msra.mxu0 0.0
      %537 = vmatprep.subr.mxu0 0.0
      %538 = vmatpush1.msra.mxu0 0.0
      %539 = vmatprep.subr.mxu0 0.0
      %540 = vmatpush1.msra.mxu0 0.0
      %541 = vmatprep.subr.mxu0 0.0
      %542 = vmatpush1.msra.mxu0 0.0
      %543 = vmatprep.subr.mxu0 0.0
      %544 = vmatpush1.msra.mxu0 0.0
      %545 = vmatprep.subr.mxu0 0.0
      %546 = vmatpush1.msra.mxu0 0.0
      %547 = vmatprep.subr.mxu0 0.0
      %548 = vmatpush1.msra.mxu0 0.0
      %549 = vmatprep.subr.mxu0 0.0
      %550 = vmatpush1.msra.mxu0 0.0
      %551 = vmatprep.mubr.f32.mxu0 0.0
      %552 = vmatmul.mubr.f32.gmra.mrb[0].mxu0 %v479
      %v553 = vpop.f32.mrb[0].mxu0
      %v554 = vadd.f32 %v404, %v553
      %v555 = vpop.f32.mrb[0].mxu0
      %v556 = vadd.f32 %v406, %v555
      %557 = vdwg.mxu0
      %558 = vmatprep.subr.mxu0 0.0
      %559 = vmatpush1.msra.mxu0 %v485
      %560 = vmatprep.subr.mxu0 0.0
      %561 = vmatpush1.msra.mxu0 0.0
      %562 = vmatprep.subr.mxu0 0.0
      %563 = vmatpush1.msra.mxu0 0.0
      %564 = vmatprep.subr.mxu0 0.0
      %565 = vmatpush1.msra.mxu0 0.0
      %566 = vmatprep.subr.mxu0 0.0
      %567 = vmatpush1.msra.mxu0 0.0
      %568 = vmatprep.subr.mxu0 0.0
      %569 = vmatpush1.msra.mxu0 0.0
      %570 = vmatprep.subr.mxu0 0.0
      %571 = vmatpush1.msra.mxu0 0.0
      %572 = vmatprep.subr.mxu0 0.0
      %573 = vmatpush1.msra.mxu0 0.0
      %574 = vmatprep.subr.mxu0 0.0
      %575 = vmatpush1.msra.mxu0 0.0
      %576 = vmatprep.subr.mxu0 0.0
      %577 = vmatpush1.msra.mxu0 0.0
      %578 = vmatprep.subr.mxu0 0.0
      %579 = vmatpush1.msra.mxu0 0.0
      %580 = vmatprep.subr.mxu0 0.0
      %581 = vmatpush1.msra.mxu0 0.0
      %582 = vmatprep.subr.mxu0 0.0
      %583 = vmatpush1.msra.mxu0 0.0
      %584 = vmatprep.subr.mxu0 0.0
      %585 = vmatpush1.msra.mxu0 0.0
      %586 = vmatprep.subr.mxu0 0.0
      %587 = vmatpush1.msra.mxu0 0.0
      %588 = vmatprep.subr.mxu0 0.0
      %589 = vmatpush1.msra.mxu0 0.0
      %590 = vmatprep.subr.mxu0 0.0
      %591 = vmatpush1.msra.mxu0 0.0
      %592 = vmatprep.subr.mxu0 0.0
      %593 = vmatpush1.msra.mxu0 0.0
      %594 = vmatprep.subr.mxu0 0.0
      %595 = vmatpush1.msra.mxu0 0.0
      %596 = vmatprep.subr.mxu0 0.0
      %597 = vmatpush1.msra.mxu0 0.0
      %598 = vmatprep.subr.mxu0 0.0
      %599 = vmatpush1.msra.mxu0 0.0
      %600 = vmatprep.subr.mxu0 0.0
      %601 = vmatpush1.msra.mxu0 0.0
      %602 = vmatprep.subr.mxu0 0.0
      %603 = vmatpush1.msra.mxu0 0.0
      %604 = vmatprep.subr.mxu0 0.0
      %605 = vmatpush1.msra.mxu0 0.0
      %606 = vmatprep.subr.mxu0 0.0
      %607 = vmatpush1.msra.mxu0 0.0
      %608 = vmatprep.subr.mxu0 0.0
      %609 = vmatpush1.msra.mxu0 0.0
      %610 = vmatprep.subr.mxu0 0.0
      %611 = vmatpush1.msra.mxu0 0.0
      %612 = vmatprep.subr.mxu0 0.0
      %613 = vmatpush1.msra.mxu0 0.0
      %614 = vmatprep.subr.mxu0 0.0
      %615 = vmatpush1.msra.mxu0 0.0
      %616 = vmatprep.subr.mxu0 0.0
      %617 = vmatpush1.msra.mxu0 0.0
      %618 = vmatprep.subr.mxu0 0.0
      %619 = vmatpush1.msra.mxu0 0.0
      %620 = vmatprep.subr.mxu0 0.0
      %621 = vmatpush1.msra.mxu0 0.0
      %622 = vmatprep.mubr.f32.mxu0 0.0
      %623 = vmatmul.mubr.f32.gmra.mrb[0].mxu0 %v479
      %v624 = vpop.f32.mrb[0].mxu0
      %v625 = vadd.f32 %v475, %v624
      %v626 = vpop.f32.mrb[0].mxu0
      %627 = vdwg.mxu0
      %s628 = scalar_lea.vmem %s2, 16
      %v629 = vld [vmem:[%s628] sm:$0xff]
      %630 = vrot.lane.b32.xlu0 %v303, 126
      %v631 = vpop.permute.xlu0 %630
      %632 = vrot.lane.b32.xlu0 %v309, 126
      %v633 = vpop.permute.xlu0 %632
      %634 = vrot.lane.b32.xlu0 %v304, 126
      %v635 = vpop.permute.xlu0 %634
      %636 = vrot.lane.b32.xlu0 %v306, 126
      %v637 = vpop.permute.xlu0 %636
      %vm638 = vcmask 1031168
      %v639 = vsel %vm638, %v631, %v633
      %v640 = vsel %vm638, %v633, %v635
      %v641 = vsel %vm638, %v635, %v637
      %v643 = vsel %vm326, %v629, 0
      %v645 = vsel %vm330, %v639, 0
      %v647 = vsel %vm330, %v640, 0
      %v649 = vsel %vm330, %v641, 0
      %651 = vmatprep.subr.mxu0 %v647
      %652 = vmatpush1.msra.mxu0 %v645
      %653 = vmatprep.subr.mxu0 0.0
      %654 = vmatpush1.msra.mxu0 0.0
      %655 = vmatprep.subr.mxu0 0.0
      %656 = vmatpush1.msra.mxu0 0.0
      %657 = vmatprep.subr.mxu0 0.0
      %658 = vmatpush1.msra.mxu0 0.0
      %659 = vmatprep.subr.mxu0 0.0
      %660 = vmatpush1.msra.mxu0 0.0
      %661 = vmatprep.subr.mxu0 0.0
      %662 = vmatpush1.msra.mxu0 0.0
      %663 = vmatprep.subr.mxu0 0.0
      %664 = vmatpush1.msra.mxu0 0.0
      %665 = vmatprep.subr.mxu0 0.0
      %666 = vmatpush1.msra.mxu0 0.0
      %667 = vmatprep.subr.mxu0 0.0
      %668 = vmatpush1.msra.mxu0 0.0
      %669 = vmatprep.subr.mxu0 0.0
      %670 = vmatpush1.msra.mxu0 0.0
      %671 = vmatprep.subr.mxu0 0.0
      %672 = vmatpush1.msra.mxu0 0.0
      %673 = vmatprep.subr.mxu0 0.0
      %674 = vmatpush1.msra.mxu0 0.0
      %675 = vmatprep.subr.mxu0 0.0
      %676 = vmatpush1.msra.mxu0 0.0
      %677 = vmatprep.subr.mxu0 0.0
      %678 = vmatpush1.msra.mxu0 0.0
      %679 = vmatprep.subr.mxu0 0.0
      %680 = vmatpush1.msra.mxu0 0.0
      %681 = vmatprep.subr.mxu0 0.0
      %682 = vmatpush1.msra.mxu0 0.0
      %683 = vmatprep.subr.mxu0 0.0
      %684 = vmatpush1.msra.mxu0 0.0
      %685 = vmatprep.subr.mxu0 0.0
      %686 = vmatpush1.msra.mxu0 0.0
      %687 = vmatprep.subr.mxu0 0.0
      %688 = vmatpush1.msra.mxu0 0.0
      %689 = vmatprep.subr.mxu0 0.0
      %690 = vmatpush1.msra.mxu0 0.0
      %691 = vmatprep.subr.mxu0 0.0
      %692 = vmatpush1.msra.mxu0 0.0
      %693 = vmatprep.subr.mxu0 0.0
      %694 = vmatpush1.msra.mxu0 0.0
      %695 = vmatprep.subr.mxu0 0.0
      %696 = vmatpush1.msra.mxu0 0.0
      %697 = vmatprep.subr.mxu0 0.0
      %698 = vmatpush1.msra.mxu0 0.0
      %699 = vmatprep.subr.mxu0 0.0
      %700 = vmatpush1.msra.mxu0 0.0
      %701 = vmatprep.subr.mxu0 0.0
      %702 = vmatpush1.msra.mxu0 0.0
      %703 = vmatprep.subr.mxu0 0.0
      %704 = vmatpush1.msra.mxu0 0.0
      %705 = vmatprep.subr.mxu0 0.0
      %706 = vmatpush1.msra.mxu0 0.0
      %707 = vmatprep.subr.mxu0 0.0
      %708 = vmatpush1.msra.mxu0 0.0
      %709 = vmatprep.subr.mxu0 0.0
      %710 = vmatpush1.msra.mxu0 0.0
      %711 = vmatprep.subr.mxu0 0.0
      %712 = vmatpush1.msra.mxu0 0.0
      %713 = vmatprep.subr.mxu0 0.0
      %714 = vmatpush1.msra.mxu0 0.0
      %715 = vmatprep.mubr.f32.mxu0 0.0
      %716 = vmatmul.mubr.f32.gmra.mrb[0].mxu0 %v643
      %v717 = vpop.f32.mrb[0].mxu0
      %v718 = vadd.f32 0.0, %v717
      %v719 = vpop.f32.mrb[0].mxu0
      %v720 = vadd.f32 0.0, %v719
      %721 = vdwg.mxu0
      %722 = vmatprep.subr.mxu0 0.0
      %723 = vmatpush1.msra.mxu0 %v649
      %724 = vmatprep.subr.mxu0 0.0
      %725 = vmatpush1.msra.mxu0 0.0
      %726 = vmatprep.subr.mxu0 0.0
      %727 = vmatpush1.msra.mxu0 0.0
      %728 = vmatprep.subr.mxu0 0.0
      %729 = vmatpush1.msra.mxu0 0.0
      %730 = vmatprep.subr.mxu0 0.0
      %731 = vmatpush1.msra.mxu0 0.0
      %732 = vmatprep.subr.mxu0 0.0
      %733 = vmatpush1.msra.mxu0 0.0
      %734 = vmatprep.subr.mxu0 0.0
      %735 = vmatpush1.msra.mxu0 0.0
      %736 = vmatprep.subr.mxu0 0.0
      %737 = vmatpush1.msra.mxu0 0.0
      %738 = vmatprep.subr.mxu0 0.0
      %739 = vmatpush1.msra.mxu0 0.0
      %740 = vmatprep.subr.mxu0 0.0
      %741 = vmatpush1.msra.mxu0 0.0
      %742 = vmatprep.subr.mxu0 0.0
      %743 = vmatpush1.msra.mxu0 0.0
      %744 = vmatprep.subr.mxu0 0.0
      %745 = vmatpush1.msra.mxu0 0.0
      %746 = vmatprep.subr.mxu0 0.0
      %747 = vmatpush1.msra.mxu0 0.0
      %748 = vmatprep.subr.mxu0 0.0
      %749 = vmatpush1.msra.mxu0 0.0
      %750 = vmatprep.subr.mxu0 0.0
      %751 = vmatpush1.msra.mxu0 0.0
      %752 = vmatprep.subr.mxu0 0.0
      %753 = vmatpush1.msra.mxu0 0.0
      %754 = vmatprep.subr.mxu0 0.0
      %755 = vmatpush1.msra.mxu0 0.0
      %756 = vmatprep.subr.mxu0 0.0
      %757 = vmatpush1.msra.mxu0 0.0
      %758 = vmatprep.subr.mxu0 0.0
      %759 = vmatpush1.msra.mxu0 0.0
      %760 = vmatprep.subr.mxu0 0.0
      %761 = vmatpush1.msra.mxu0 0.0
      %762 = vmatprep.subr.mxu0 0.0
      %763 = vmatpush1.msra.mxu0 0.0
      %764 = vmatprep.subr.mxu0 0.0
      %765 = vmatpush1.msra.mxu0 0.0
      %766 = vmatprep.subr.mxu0 0.0
      %767 = vmatpush1.msra.mxu0 0.0
      %768 = vmatprep.subr.mxu0 0.0
      %769 = vmatpush1.msra.mxu0 0.0
      %770 = vmatprep.subr.mxu0 0.0
      %771 = vmatpush1.msra.mxu0 0.0
      %772 = vmatprep.subr.mxu0 0.0
      %773 = vmatpush1.msra.mxu0 0.0
      %774 = vmatprep.subr.mxu0 0.0
      %775 = vmatpush1.msra.mxu0 0.0
      %776 = vmatprep.subr.mxu0 0.0
      %777 = vmatpush1.msra.mxu0 0.0
      %778 = vmatprep.subr.mxu0 0.0
      %779 = vmatpush1.msra.mxu0 0.0
      %780 = vmatprep.subr.mxu0 0.0
      %781 = vmatpush1.msra.mxu0 0.0
      %782 = vmatprep.subr.mxu0 0.0
      %783 = vmatpush1.msra.mxu0 0.0
      %784 = vmatprep.subr.mxu0 0.0
      %785 = vmatpush1.msra.mxu0 0.0
      %786 = vmatprep.mubr.f32.mxu0 0.0
      %787 = vmatmul.mubr.f32.gmra.mrb[0].mxu0 %v643
      %v788 = vpop.f32.mrb[0].mxu0
      %v789 = vadd.f32 0.0, %v788
      %v790 = vpop.f32.mrb[0].mxu0
      %791 = vdwg.mxu0
      %v792 = vadd.f32 %v554, %v718
      %v793 = vadd.f32 %v556, %v720
      %v794 = vadd.f32 %v625, %v789
      %s795 = scalar_lea.vmem %s2, 24
      %v796 = vld [vmem:[%s795] sm:$0xff]
      %797 = vrot.lane.b32.xlu0 %v303, 110
      %v798 = vpop.permute.xlu0 %797
      %799 = vrot.lane.b32.xlu0 %v309, 110
      %v800 = vpop.permute.xlu0 %799
      %801 = vrot.lane.b32.xlu0 %v304, 110
      %v802 = vpop.permute.xlu0 %801
      %803 = vrot.lane.b32.xlu0 %v306, 110
      %v804 = vpop.permute.xlu0 %803
      %vm805 = vcmask 900096
      %v806 = vsel %vm805, %v798, %v800
      %v807 = vsel %vm805, %v800, %v802
      %v808 = vsel %vm805, %v802, %v804
      %v810 = vsel %vm326, %v796, 0
      %v812 = vsel %vm330, %v806, 0
      %v814 = vsel %vm330, %v807, 0
      %v816 = vsel %vm330, %v808, 0
      %818 = vmatprep.subr.mxu0 %v814
      %819 = vmatpush1.msra.mxu0 %v812
      %820 = vmatprep.subr.mxu0 0.0
      %821 = vmatpush1.msra.mxu0 0.0
      %822 = vmatprep.subr.mxu0 0.0
      %823 = vmatpush1.msra.mxu0 0.0
      %824 = vmatprep.subr.mxu0 0.0
      %825 = vmatpush1.msra.mxu0 0.0
      %826 = vmatprep.subr.mxu0 0.0
      %827 = vmatpush1.msra.mxu0 0.0
      %828 = vmatprep.subr.mxu0 0.0
      %829 = vmatpush1.msra.mxu0 0.0
      %830 = vmatprep.subr.mxu0 0.0
      %831 = vmatpush1.msra.mxu0 0.0
      %832 = vmatprep.subr.mxu0 0.0
      %833 = vmatpush1.msra.mxu0 0.0
      %834 = vmatprep.subr.mxu0 0.0
      %835 = vmatpush1.msra.mxu0 0.0
      %836 = vmatprep.subr.mxu0 0.0
      %837 = vmatpush1.msra.mxu0 0.0
      %838 = vmatprep.subr.mxu0 0.0
      %839 = vmatpush1.msra.mxu0 0.0
      %840 = vmatprep.subr.mxu0 0.0
      %841 = vmatpush1.msra.mxu0 0.0
      %842 = vmatprep.subr.mxu0 0.0
      %843 = vmatpush1.msra.mxu0 0.0
      %844 = vmatprep.subr.mxu0 0.0
      %845 = vmatpush1.msra.mxu0 0.0
      %846 = vmatprep.subr.mxu0 0.0
      %847 = vmatpush1.msra.mxu0 0.0
      %848 = vmatprep.subr.mxu0 0.0
      %849 = vmatpush1.msra.mxu0 0.0
      %850 = vmatprep.subr.mxu0 0.0
      %851 = vmatpush1.msra.mxu0 0.0
      %852 = vmatprep.subr.mxu0 0.0
      %853 = vmatpush1.msra.mxu0 0.0
      %854 = vmatprep.subr.mxu0 0.0
      %855 = vmatpush1.msra.mxu0 0.0
      %856 = vmatprep.subr.mxu0 0.0
      %857 = vmatpush1.msra.mxu0 0.0
      %858 = vmatprep.subr.mxu0 0.0
      %859 = vmatpush1.msra.mxu0 0.0
      %860 = vmatprep.subr.mxu0 0.0
      %861 = vmatpush1.msra.mxu0 0.0
      %862 = vmatprep.subr.mxu0 0.0
      %863 = vmatpush1.msra.mxu0 0.0
      %864 = vmatprep.subr.mxu0 0.0
      %865 = vmatpush1.msra.mxu0 0.0
      %866 = vmatprep.subr.mxu0 0.0
      %867 = vmatpush1.msra.mxu0 0.0
      %868 = vmatprep.subr.mxu0 0.0
      %869 = vmatpush1.msra.mxu0 0.0
      %870 = vmatprep.subr.mxu0 0.0
      %871 = vmatpush1.msra.mxu0 0.0
      %872 = vmatprep.subr.mxu0 0.0
      %873 = vmatpush1.msra.mxu0 0.0
      %874 = vmatprep.subr.mxu0 0.0
      %875 = vmatpush1.msra.mxu0 0.0
      %876 = vmatprep.subr.mxu0 0.0
      %877 = vmatpush1.msra.mxu0 0.0
      %878 = vmatprep.subr.mxu0 0.0
      %879 = vmatpush1.msra.mxu0 0.0
      %880 = vmatprep.subr.mxu0 0.0
      %881 = vmatpush1.msra.mxu0 0.0
      %882 = vmatprep.mubr.f32.mxu0 0.0
      %883 = vmatmul.mubr.f32.gmra.mrb[0].mxu0 %v810
      %v884 = vpop.f32.mrb[0].mxu0
      %v885 = vadd.f32 0.0, %v884
      %v886 = vpop.f32.mrb[0].mxu0
      %v887 = vadd.f32 0.0, %v886
      %888 = vdwg.mxu0
      %889 = vmatprep.subr.mxu0 0.0
      %890 = vmatpush1.msra.mxu0 %v816
      %891 = vmatprep.subr.mxu0 0.0
      %892 = vmatpush1.msra.mxu0 0.0
      %893 = vmatprep.subr.mxu0 0.0
      %894 = vmatpush1.msra.mxu0 0.0
      %895 = vmatprep.subr.mxu0 0.0
      %896 = vmatpush1.msra.mxu0 0.0
      %897 = vmatprep.subr.mxu0 0.0
      %898 = vmatpush1.msra.mxu0 0.0
      %899 = vmatprep.subr.mxu0 0.0
      %900 = vmatpush1.msra.mxu0 0.0
      %901 = vmatprep.subr.mxu0 0.0
      %902 = vmatpush1.msra.mxu0 0.0
      %903 = vmatprep.subr.mxu0 0.0
      %904 = vmatpush1.msra.mxu0 0.0
      %905 = vmatprep.subr.mxu0 0.0
      %906 = vmatpush1.msra.mxu0 0.0
      %907 = vmatprep.subr.mxu0 0.0
      %908 = vmatpush1.msra.mxu0 0.0
      %909 = vmatprep.subr.mxu0 0.0
      %910 = vmatpush1.msra.mxu0 0.0
      %911 = vmatprep.subr.mxu0 0.0
      %912 = vmatpush1.msra.mxu0 0.0
      %913 = vmatprep.subr.mxu0 0.0
      %914 = vmatpush1.msra.mxu0 0.0
      %915 = vmatprep.subr.mxu0 0.0
      %916 = vmatpush1.msra.mxu0 0.0
      %917 = vmatprep.subr.mxu0 0.0
      %918 = vmatpush1.msra.mxu0 0.0
      %919 = vmatprep.subr.mxu0 0.0
      %920 = vmatpush1.msra.mxu0 0.0
      %921 = vmatprep.subr.mxu0 0.0
      %922 = vmatpush1.msra.mxu0 0.0
      %923 = vmatprep.subr.mxu0 0.0
      %924 = vmatpush1.msra.mxu0 0.0
      %925 = vmatprep.subr.mxu0 0.0
      %926 = vmatpush1.msra.mxu0 0.0
      %927 = vmatprep.subr.mxu0 0.0
      %928 = vmatpush1.msra.mxu0 0.0
      %929 = vmatprep.subr.mxu0 0.0
      %930 = vmatpush1.msra.mxu0 0.0
      %931 = vmatprep.subr.mxu0 0.0
      %932 = vmatpush1.msra.mxu0 0.0
      %933 = vmatprep.subr.mxu0 0.0
      %934 = vmatpush1.msra.mxu0 0.0
      %935 = vmatprep.subr.mxu0 0.0
      %936 = vmatpush1.msra.mxu0 0.0
      %937 = vmatprep.subr.mxu0 0.0
      %938 = vmatpush1.msra.mxu0 0.0
      %939 = vmatprep.subr.mxu0 0.0
      %940 = vmatpush1.msra.mxu0 0.0
      %941 = vmatprep.subr.mxu0 0.0
      %942 = vmatpush1.msra.mxu0 0.0
      %943 = vmatprep.subr.mxu0 0.0
      %944 = vmatpush1.msra.mxu0 0.0
      %945 = vmatprep.subr.mxu0 0.0
      %946 = vmatpush1.msra.mxu0 0.0
      %947 = vmatprep.subr.mxu0 0.0
      %948 = vmatpush1.msra.mxu0 0.0
      %949 = vmatprep.subr.mxu0 0.0
      %950 = vmatpush1.msra.mxu0 0.0
      %951 = vmatprep.subr.mxu0 0.0
      %952 = vmatpush1.msra.mxu0 0.0
      %953 = vmatprep.mubr.f32.mxu0 0.0
      %954 = vmatmul.mubr.f32.gmra.mrb[0].mxu0 %v810
      %v955 = vpop.f32.mrb[0].mxu0
      %v956 = vadd.f32 0.0, %v955
      %v957 = vpop.f32.mrb[0].mxu0
      %958 = vdwg.mxu0
      %v959 = vadd.f32 %v792, %v885
      %v960 = vadd.f32 %v793, %v887
      %v961 = vadd.f32 %v794, %v956
      %s962 = scalar_lea.vmem %s2, 32
      %v963 = vld [vmem:[%s962] sm:$0xff]
      %964 = vrot.lane.b32.xlu0 %v303, 109
      %v965 = vpop.permute.xlu0 %964
      %966 = vrot.lane.b32.xlu0 %v309, 109
      %v967 = vpop.permute.xlu0 %966
      %968 = vrot.lane.b32.xlu0 %v304, 109
      %v969 = vpop.permute.xlu0 %968
      %970 = vrot.lane.b32.xlu0 %v306, 109
      %v971 = vpop.permute.xlu0 %970
      %vm972 = vcmask 891904
      %v973 = vsel %vm972, %v965, %v967
      %v974 = vsel %vm972, %v967, %v969
      %v975 = vsel %vm972, %v969, %v971
      %v977 = vsel %vm326, %v963, 0
      %v979 = vsel %vm330, %v973, 0
      %v981 = vsel %vm330, %v974, 0
      %v983 = vsel %vm330, %v975, 0
      %985 = vmatprep.subr.mxu0 %v981
      %986 = vmatpush1.msra.mxu0 %v979
      %987 = vmatprep.subr.mxu0 0.0
      %988 = vmatpush1.msra.mxu0 0.0
      %989 = vmatprep.subr.mxu0 0.0
      %990 = vmatpush1.msra.mxu0 0.0
      %991 = vmatprep.subr.mxu0 0.0
      %992 = vmatpush1.msra.mxu0 0.0
      %993 = vmatprep.subr.mxu0 0.0
      %994 = vmatpush1.msra.mxu0 0.0
      %995 = vmatprep.subr.mxu0 0.0
      %996 = vmatpush1.msra.mxu0 0.0
      %997 = vmatprep.subr.mxu0 0.0
      %998 = vmatpush1.msra.mxu0 0.0
      %999 = vmatprep.subr.mxu0 0.0
      %1000 = vmatpush1.msra.mxu0 0.0
      %1001 = vmatprep.subr.mxu0 0.0
      %1002 = vmatpush1.msra.mxu0 0.0
      %1003 = vmatprep.subr.mxu0 0.0
      %1004 = vmatpush1.msra.mxu0 0.0
      %1005 = vmatprep.subr.mxu0 0.0
      %1006 = vmatpush1.msra.mxu0 0.0
      %1007 = vmatprep.subr.mxu0 0.0
      %1008 = vmatpush1.msra.mxu0 0.0
      %1009 = vmatprep.subr.mxu0 0.0
      %1010 = vmatpush1.msra.mxu0 0.0
      %1011 = vmatprep.subr.mxu0 0.0
      %1012 = vmatpush1.msra.mxu0 0.0
      %1013 = vmatprep.subr.mxu0 0.0
      %1014 = vmatpush1.msra.mxu0 0.0
      %1015 = vmatprep.subr.mxu0 0.0
      %1016 = vmatpush1.msra.mxu0 0.0
      %1017 = vmatprep.subr.mxu0 0.0
      %1018 = vmatpush1.msra.mxu0 0.0
      %1019 = vmatprep.subr.mxu0 0.0
      %1020 = vmatpush1.msra.mxu0 0.0
      %1021 = vmatprep.subr.mxu0 0.0
      %1022 = vmatpush1.msra.mxu0 0.0
      %1023 = vmatprep.subr.mxu0 0.0
      %1024 = vmatpush1.msra.mxu0 0.0
      %1025 = vmatprep.subr.mxu0 0.0
      %1026 = vmatpush1.msra.mxu0 0.0
      %1027 = vmatprep.subr.mxu0 0.0
      %1028 = vmatpush1.msra.mxu0 0.0
      %1029 = vmatprep.subr.mxu0 0.0
      %1030 = vmatpush1.msra.mxu0 0.0
      %1031 = vmatprep.subr.mxu0 0.0
      %1032 = vmatpush1.msra.mxu0 0.0
      %1033 = vmatprep.subr.mxu0 0.0
      %1034 = vmatpush1.msra.mxu0 0.0
      %1035 = vmatprep.subr.mxu0 0.0
      %1036 = vmatpush1.msra.mxu0 0.0
      %1037 = vmatprep.subr.mxu0 0.0
      %1038 = vmatpush1.msra.mxu0 0.0
      %1039 = vmatprep.subr.mxu0 0.0
      %1040 = vmatpush1.msra.mxu0 0.0
      %1041 = vmatprep.subr.mxu0 0.0
      %1042 = vmatpush1.msra.mxu0 0.0
      %1043 = vmatprep.subr.mxu0 0.0
      %1044 = vmatpush1.msra.mxu0 0.0
      %1045 = vmatprep.subr.mxu0 0.0
      %1046 = vmatpush1.msra.mxu0 0.0
      %1047 = vmatprep.subr.mxu0 0.0
      %1048 = vmatpush1.msra.mxu0 0.0
      %1049 = vmatprep.mubr.f32.mxu0 0.0
      %1050 = vmatmul.mubr.f32.gmra.mrb[0].mxu0 %v977
      %v1051 = vpop.f32.mrb[0].mxu0
      %v1052 = vadd.f32 0.0, %v1051
      %v1053 = vpop.f32.mrb[0].mxu0
      %v1054 = vadd.f32 0.0, %v1053
      %1055 = vdwg.mxu0
      %1056 = vmatprep.subr.mxu0 0.0
      %1057 = vmatpush1.msra.mxu0 %v983
      %1058 = vmatprep.subr.mxu0 0.0
      %1059 = vmatpush1.msra.mxu0 0.0
      %1060 = vmatprep.subr.mxu0 0.0
      %1061 = vmatpush1.msra.mxu0 0.0
      %1062 = vmatprep.subr.mxu0 0.0
      %1063 = vmatpush1.msra.mxu0 0.0
      %1064 = vmatprep.subr.mxu0 0.0
      %1065 = vmatpush1.msra.mxu0 0.0
      %1066 = vmatprep.subr.mxu0 0.0
      %1067 = vmatpush1.msra.mxu0 0.0
      %1068 = vmatprep.subr.mxu0 0.0
      %1069 = vmatpush1.msra.mxu0 0.0
      %1070 = vmatprep.subr.mxu0 0.0
      %1071 = vmatpush1.msra.mxu0 0.0
      %1072 = vmatprep.subr.mxu0 0.0
      %1073 = vmatpush1.msra.mxu0 0.0
      %1074 = vmatprep.subr.mxu0 0.0
      %1075 = vmatpush1.msra.mxu0 0.0
      %1076 = vmatprep.subr.mxu0 0.0
      %1077 = vmatpush1.msra.mxu0 0.0
      %1078 = vmatprep.subr.mxu0 0.0
      %1079 = vmatpush1.msra.mxu0 0.0
      %1080 = vmatprep.subr.mxu0 0.0
      %1081 = vmatpush1.msra.mxu0 0.0
      %1082 = vmatprep.subr.mxu0 0.0
      %1083 = vmatpush1.msra.mxu0 0.0
      %1084 = vmatprep.subr.mxu0 0.0
      %1085 = vmatpush1.msra.mxu0 0.0
      %1086 = vmatprep.subr.mxu0 0.0
      %1087 = vmatpush1.msra.mxu0 0.0
      %1088 = vmatprep.subr.mxu0 0.0
      %1089 = vmatpush1.msra.mxu0 0.0
      %1090 = vmatprep.subr.mxu0 0.0
      %1091 = vmatpush1.msra.mxu0 0.0
      %1092 = vmatprep.subr.mxu0 0.0
      %1093 = vmatpush1.msra.mxu0 0.0
      %1094 = vmatprep.subr.mxu0 0.0
      %1095 = vmatpush1.msra.mxu0 0.0
      %1096 = vmatprep.subr.mxu0 0.0
      %1097 = vmatpush1.msra.mxu0 0.0
      %1098 = vmatprep.subr.mxu0 0.0
      %1099 = vmatpush1.msra.mxu0 0.0
      %1100 = vmatprep.subr.mxu0 0.0
      %1101 = vmatpush1.msra.mxu0 0.0
      %1102 = vmatprep.subr.mxu0 0.0
      %1103 = vmatpush1.msra.mxu0 0.0
      %1104 = vmatprep.subr.mxu0 0.0
      %1105 = vmatpush1.msra.mxu0 0.0
      %1106 = vmatprep.subr.mxu0 0.0
      %1107 = vmatpush1.msra.mxu0 0.0
      %1108 = vmatprep.subr.mxu0 0.0
      %1109 = vmatpush1.msra.mxu0 0.0
      %1110 = vmatprep.subr.mxu0 0.0
      %1111 = vmatpush1.msra.mxu0 0.0
      %1112 = vmatprep.subr.mxu0 0.0
      %1113 = vmatpush1.msra.mxu0 0.0
      %1114 = vmatprep.subr.mxu0 0.0
      %1115 = vmatpush1.msra.mxu0 0.0
      %1116 = vmatprep.subr.mxu0 0.0
      %1117 = vmatpush1.msra.mxu0 0.0
      %1118 = vmatprep.subr.mxu0 0.0
      %1119 = vmatpush1.msra.mxu0 0.0
      %1120 = vmatprep.mubr.f32.mxu0 0.0
      %1121 = vmatmul.mubr.f32.gmra.mrb[0].mxu0 %v977
      %v1122 = vpop.f32.mrb[0].mxu0
      %v1123 = vadd.f32 0.0, %v1122
      %v1124 = vpop.f32.mrb[0].mxu0
      %1125 = vdwg.mxu0
      %v1126 = vadd.f32 %v959, %v1052
      %v1127 = vadd.f32 %v960, %v1054
      %v1128 = vadd.f32 %v961, %v1123
      %s1129 = scalar_lea.vmem %s2, 40
      %v1130 = vld [vmem:[%s1129] sm:$0xff]
      %1131 = vrot.lane.b32.xlu0 %v303, 108
      %v1132 = vpop.permute.xlu0 %1131
      %1133 = vrot.lane.b32.xlu0 %v309, 108
      %v1134 = vpop.permute.xlu0 %1133
      %1135 = vrot.lane.b32.xlu0 %v304, 108
      %v1136 = vpop.permute.xlu0 %1135
      %1137 = vrot.lane.b32.xlu0 %v306, 108
      %v1138 = vpop.permute.xlu0 %1137
      %vm1139 = vcmask 883712
      %v1140 = vsel %vm1139, %v1132, %v1134
      %v1141 = vsel %vm1139, %v1134, %v1136
      %v1142 = vsel %vm1139, %v1136, %v1138
      %v1144 = vsel %vm326, %v1130, 0
      %v1146 = vsel %vm330, %v1140, 0
      %v1148 = vsel %vm330, %v1141, 0
      %v1150 = vsel %vm330, %v1142, 0
      %1152 = vmatprep.subr.mxu0 %v1148
      %1153 = vmatpush1.msra.mxu0 %v1146
      %1154 = vmatprep.subr.mxu0 0.0
      %1155 = vmatpush1.msra.mxu0 0.0
      %1156 = vmatprep.subr.mxu0 0.0
      %1157 = vmatpush1.msra.mxu0 0.0
      %1158 = vmatprep.subr.mxu0 0.0
      %1159 = vmatpush1.msra.mxu0 0.0
      %1160 = vmatprep.subr.mxu0 0.0
      %1161 = vmatpush1.msra.mxu0 0.0
      %1162 = vmatprep.subr.mxu0 0.0
      %1163 = vmatpush1.msra.mxu0 0.0
      %1164 = vmatprep.subr.mxu0 0.0
      %1165 = vmatpush1.msra.mxu0 0.0
      %1166 = vmatprep.subr.mxu0 0.0
      %1167 = vmatpush1.msra.mxu0 0.0
      %1168 = vmatprep.subr.mxu0 0.0
      %1169 = vmatpush1.msra.mxu0 0.0
      %1170 = vmatprep.subr.mxu0 0.0
      %1171 = vmatpush1.msra.mxu0 0.0
      %1172 = vmatprep.subr.mxu0 0.0
      %1173 = vmatpush1.msra.mxu0 0.0
      %1174 = vmatprep.subr.mxu0 0.0
      %1175 = vmatpush1.msra.mxu0 0.0
      %1176 = vmatprep.subr.mxu0 0.0
      %1177 = vmatpush1.msra.mxu0 0.0
      %1178 = vmatprep.subr.mxu0 0.0
      %1179 = vmatpush1.msra.mxu0 0.0
      %1180 = vmatprep.subr.mxu0 0.0
      %1181 = vmatpush1.msra.mxu0 0.0
      %1182 = vmatprep.subr.mxu0 0.0
      %1183 = vmatpush1.msra.mxu0 0.0
      %1184 = vmatprep.subr.mxu0 0.0
      %1185 = vmatpush1.msra.mxu0 0.0
      %1186 = vmatprep.subr.mxu0 0.0
      %1187 = vmatpush1.msra.mxu0 0.0
      %1188 = vmatprep.subr.mxu0 0.0
      %1189 = vmatpush1.msra.mxu0 0.0
      %1190 = vmatprep.subr.mxu0 0.0
      %1191 = vmatpush1.msra.mxu0 0.0
      %1192 = vmatprep.subr.mxu0 0.0
      %1193 = vmatpush1.msra.mxu0 0.0
      %1194 = vmatprep.subr.mxu0 0.0
      %1195 = vmatpush1.msra.mxu0 0.0
      %1196 = vmatprep.subr.mxu0 0.0
      %1197 = vmatpush1.msra.mxu0 0.0
      %1198 = vmatprep.subr.mxu0 0.0
      %1199 = vmatpush1.msra.mxu0 0.0
      %1200 = vmatprep.subr.mxu0 0.0
      %1201 = vmatpush1.msra.mxu0 0.0
      %1202 = vmatprep.subr.mxu0 0.0
      %1203 = vmatpush1.msra.mxu0 0.0
      %1204 = vmatprep.subr.mxu0 0.0
      %1205 = vmatpush1.msra.mxu0 0.0
      %1206 = vmatprep.subr.mxu0 0.0
      %1207 = vmatpush1.msra.mxu0 0.0
      %1208 = vmatprep.subr.mxu0 0.0
      %1209 = vmatpush1.msra.mxu0 0.0
      %1210 = vmatprep.subr.mxu0 0.0
      %1211 = vmatpush1.msra.mxu0 0.0
      %1212 = vmatprep.subr.mxu0 0.0
      %1213 = vmatpush1.msra.mxu0 0.0
      %1214 = vmatprep.subr.mxu0 0.0
      %1215 = vmatpush1.msra.mxu0 0.0
      %1216 = vmatprep.mubr.f32.mxu0 0.0
      %1217 = vmatmul.mubr.f32.gmra.mrb[0].mxu0 %v1144
      %v1218 = vpop.f32.mrb[0].mxu0
      %v1219 = vadd.f32 0.0, %v1218
      %v1220 = vpop.f32.mrb[0].mxu0
      %v1221 = vadd.f32 0.0, %v1220
      %1222 = vdwg.mxu0
      %1223 = vmatprep.subr.mxu0 0.0
      %1224 = vmatpush1.msra.mxu0 %v1150
      %1225 = vmatprep.subr.mxu0 0.0
      %1226 = vmatpush1.msra.mxu0 0.0
      %1227 = vmatprep.subr.mxu0 0.0
      %1228 = vmatpush1.msra.mxu0 0.0
      %1229 = vmatprep.subr.mxu0 0.0
      %1230 = vmatpush1.msra.mxu0 0.0
      %1231 = vmatprep.subr.mxu0 0.0
      %1232 = vmatpush1.msra.mxu0 0.0
      %1233 = vmatprep.subr.mxu0 0.0
      %1234 = vmatpush1.msra.mxu0 0.0
      %1235 = vmatprep.subr.mxu0 0.0
      %1236 = vmatpush1.msra.mxu0 0.0
      %1237 = vmatprep.subr.mxu0 0.0
      %1238 = vmatpush1.msra.mxu0 0.0
      %1239 = vmatprep.subr.mxu0 0.0
      %1240 = vmatpush1.msra.mxu0 0.0
      %1241 = vmatprep.subr.mxu0 0.0
      %1242 = vmatpush1.msra.mxu0 0.0
      %1243 = vmatprep.subr.mxu0 0.0
      %1244 = vmatpush1.msra.mxu0 0.0
      %1245 = vmatprep.subr.mxu0 0.0
      %1246 = vmatpush1.msra.mxu0 0.0
      %1247 = vmatprep.subr.mxu0 0.0
      %1248 = vmatpush1.msra.mxu0 0.0
      %1249 = vmatprep.subr.mxu0 0.0
      %1250 = vmatpush1.msra.mxu0 0.0
      %1251 = vmatprep.subr.mxu0 0.0
      %1252 = vmatpush1.msra.mxu0 0.0
      %1253 = vmatprep.subr.mxu0 0.0
      %1254 = vmatpush1.msra.mxu0 0.0
      %1255 = vmatprep.subr.mxu0 0.0
      %1256 = vmatpush1.msra.mxu0 0.0
      %1257 = vmatprep.subr.mxu0 0.0
      %1258 = vmatpush1.msra.mxu0 0.0
      %1259 = vmatprep.subr.mxu0 0.0
      %1260 = vmatpush1.msra.mxu0 0.0
      %1261 = vmatprep.subr.mxu0 0.0
      %1262 = vmatpush1.msra.mxu0 0.0
      %1263 = vmatprep.subr.mxu0 0.0
      %1264 = vmatpush1.msra.mxu0 0.0
      %1265 = vmatprep.subr.mxu0 0.0
      %1266 = vmatpush1.msra.mxu0 0.0
      %1267 = vmatprep.subr.mxu0 0.0
      %1268 = vmatpush1.msra.mxu0 0.0
      %1269 = vmatprep.subr.mxu0 0.0
      %1270 = vmatpush1.msra.mxu0 0.0
      %1271 = vmatprep.subr.mxu0 0.0
      %1272 = vmatpush1.msra.mxu0 0.0
      %1273 = vmatprep.subr.mxu0 0.0
      %1274 = vmatpush1.msra.mxu0 0.0
      %1275 = vmatprep.subr.mxu0 0.0
      %1276 = vmatpush1.msra.mxu0 0.0
      %1277 = vmatprep.subr.mxu0 0.0
      %1278 = vmatpush1.msra.mxu0 0.0
      %1279 = vmatprep.subr.mxu0 0.0
      %1280 = vmatpush1.msra.mxu0 0.0
      %1281 = vmatprep.subr.mxu0 0.0
      %1282 = vmatpush1.msra.mxu0 0.0
      %1283 = vmatprep.subr.mxu0 0.0
      %1284 = vmatpush1.msra.mxu0 0.0
      %1285 = vmatprep.subr.mxu0 0.0
      %1286 = vmatpush1.msra.mxu0 0.0
      %1287 = vmatprep.mubr.f32.mxu0 0.0
      %1288 = vmatmul.mubr.f32.gmra.mrb[0].mxu0 %v1144
      %v1289 = vpop.f32.mrb[0].mxu0
      %v1290 = vadd.f32 0.0, %v1289
      %v1291 = vpop.f32.mrb[0].mxu0
      %1292 = vdwg.mxu0
      %v1293 = vadd.f32 %v1126, %v1219
      %v1294 = vadd.f32 %v1127, %v1221
      %v1295 = vadd.f32 %v1128, %v1290
      %s1296 = scalar_lea.vmem %s2, 48
      %v1297 = vld [vmem:[%s1296] sm:$0xff]
      %1298 = vrot.lane.b32.xlu0 %v303, 92
      %v1299 = vpop.permute.xlu0 %1298
      %1300 = vrot.lane.b32.xlu0 %v309, 92
      %v1301 = vpop.permute.xlu0 %1300
      %1302 = vrot.lane.b32.xlu0 %v304, 92
      %v1303 = vpop.permute.xlu0 %1302
      %1304 = vrot.lane.b32.xlu0 %v306, 92
      %v1305 = vpop.permute.xlu0 %1304
      %vm1306 = vcmask 752640
      %v1307 = vsel %vm1306, %v1299, %v1301
      %v1308 = vsel %vm1306, %v1301, %v1303
      %v1309 = vsel %vm1306, %v1303, %v1305
      %v1311 = vsel %vm326, %v1297, 0
      %v1313 = vsel %vm330, %v1307, 0
      %v1315 = vsel %vm330, %v1308, 0
      %v1317 = vsel %vm330, %v1309, 0
      %1319 = vmatprep.subr.mxu0 %v1315
      %1320 = vmatpush1.msra.mxu0 %v1313
      %1321 = vmatprep.subr.mxu0 0.0
      %1322 = vmatpush1.msra.mxu0 0.0
      %1323 = vmatprep.subr.mxu0 0.0
      %1324 = vmatpush1.msra.mxu0 0.0
      %1325 = vmatprep.subr.mxu0 0.0
      %1326 = vmatpush1.msra.mxu0 0.0
      %1327 = vmatprep.subr.mxu0 0.0
      %1328 = vmatpush1.msra.mxu0 0.0
      %1329 = vmatprep.subr.mxu0 0.0
      %1330 = vmatpush1.msra.mxu0 0.0
      %1331 = vmatprep.subr.mxu0 0.0
      %1332 = vmatpush1.msra.mxu0 0.0
      %1333 = vmatprep.subr.mxu0 0.0
      %1334 = vmatpush1.msra.mxu0 0.0
      %1335 = vmatprep.subr.mxu0 0.0
      %1336 = vmatpush1.msra.mxu0 0.0
      %1337 = vmatprep.subr.mxu0 0.0
      %1338 = vmatpush1.msra.mxu0 0.0
      %1339 = vmatprep.subr.mxu0 0.0
      %1340 = vmatpush1.msra.mxu0 0.0
      %1341 = vmatprep.subr.mxu0 0.0
      %1342 = vmatpush1.msra.mxu0 0.0
      %1343 = vmatprep.subr.mxu0 0.0
      %1344 = vmatpush1.msra.mxu0 0.0
      %1345 = vmatprep.subr.mxu0 0.0
      %1346 = vmatpush1.msra.mxu0 0.0
      %1347 = vmatprep.subr.mxu0 0.0
      %1348 = vmatpush1.msra.mxu0 0.0
      %1349 = vmatprep.subr.mxu0 0.0
      %1350 = vmatpush1.msra.mxu0 0.0
      %1351 = vmatprep.subr.mxu0 0.0
      %1352 = vmatpush1.msra.mxu0 0.0
      %1353 = vmatprep.subr.mxu0 0.0
      %1354 = vmatpush1.msra.mxu0 0.0
      %1355 = vmatprep.subr.mxu0 0.0
      %1356 = vmatpush1.msra.mxu0 0.0
      %1357 = vmatprep.subr.mxu0 0.0
      %1358 = vmatpush1.msra.mxu0 0.0
      %1359 = vmatprep.subr.mxu0 0.0
      %1360 = vmatpush1.msra.mxu0 0.0
      %1361 = vmatprep.subr.mxu0 0.0
      %1362 = vmatpush1.msra.mxu0 0.0
      %1363 = vmatprep.subr.mxu0 0.0
      %1364 = vmatpush1.msra.mxu0 0.0
      %1365 = vmatprep.subr.mxu0 0.0
      %1366 = vmatpush1.msra.mxu0 0.0
      %1367 = vmatprep.subr.mxu0 0.0
      %1368 = vmatpush1.msra.mxu0 0.0
      %1369 = vmatprep.subr.mxu0 0.0
      %1370 = vmatpush1.msra.mxu0 0.0
      %1371 = vmatprep.subr.mxu0 0.0
      %1372 = vmatpush1.msra.mxu0 0.0
      %1373 = vmatprep.subr.mxu0 0.0
      %1374 = vmatpush1.msra.mxu0 0.0
      %1375 = vmatprep.subr.mxu0 0.0
      %1376 = vmatpush1.msra.mxu0 0.0
      %1377 = vmatprep.subr.mxu0 0.0
      %1378 = vmatpush1.msra.mxu0 0.0
      %1379 = vmatprep.subr.mxu0 0.0
      %1380 = vmatpush1.msra.mxu0 0.0
      %1381 = vmatprep.subr.mxu0 0.0
      %1382 = vmatpush1.msra.mxu0 0.0
      %1383 = vmatprep.mubr.f32.mxu0 0.0
      %1384 = vmatmul.mubr.f32.gmra.mrb[0].mxu0 %v1311
      %v1385 = vpop.f32.mrb[0].mxu0
      %v1386 = vadd.f32 0.0, %v1385
      %v1387 = vpop.f32.mrb[0].mxu0
      %v1388 = vadd.f32 0.0, %v1387
      %1389 = vdwg.mxu0
      %1390 = vmatprep.subr.mxu0 0.0
      %1391 = vmatpush1.msra.mxu0 %v1317
      %1392 = vmatprep.subr.mxu0 0.0
      %1393 = vmatpush1.msra.mxu0 0.0
      %1394 = vmatprep.subr.mxu0 0.0
      %1395 = vmatpush1.msra.mxu0 0.0
      %1396 = vmatprep.subr.mxu0 0.0
      %1397 = vmatpush1.msra.mxu0 0.0
      %1398 = vmatprep.subr.mxu0 0.0
      %1399 = vmatpush1.msra.mxu0 0.0
      %1400 = vmatprep.subr.mxu0 0.0
      %1401 = vmatpush1.msra.mxu0 0.0
      %1402 = vmatprep.subr.mxu0 0.0
      %1403 = vmatpush1.msra.mxu0 0.0
      %1404 = vmatprep.subr.mxu0 0.0
      %1405 = vmatpush1.msra.mxu0 0.0
      %1406 = vmatprep.subr.mxu0 0.0
      %1407 = vmatpush1.msra.mxu0 0.0
      %1408 = vmatprep.subr.mxu0 0.0
      %1409 = vmatpush1.msra.mxu0 0.0
      %1410 = vmatprep.subr.mxu0 0.0
      %1411 = vmatpush1.msra.mxu0 0.0
      %1412 = vmatprep.subr.mxu0 0.0
      %1413 = vmatpush1.msra.mxu0 0.0
      %1414 = vmatprep.subr.mxu0 0.0
      %1415 = vmatpush1.msra.mxu0 0.0
      %1416 = vmatprep.subr.mxu0 0.0
      %1417 = vmatpush1.msra.mxu0 0.0
      %1418 = vmatprep.subr.mxu0 0.0
      %1419 = vmatpush1.msra.mxu0 0.0
      %1420 = vmatprep.subr.mxu0 0.0
      %1421 = vmatpush1.msra.mxu0 0.0
      %1422 = vmatprep.subr.mxu0 0.0
      %1423 = vmatpush1.msra.mxu0 0.0
      %1424 = vmatprep.subr.mxu0 0.0
      %1425 = vmatpush1.msra.mxu0 0.0
      %1426 = vmatprep.subr.mxu0 0.0
      %1427 = vmatpush1.msra.mxu0 0.0
      %1428 = vmatprep.subr.mxu0 0.0
      %1429 = vmatpush1.msra.mxu0 0.0
      %1430 = vmatprep.subr.mxu0 0.0
      %1431 = vmatpush1.msra.mxu0 0.0
      %1432 = vmatprep.subr.mxu0 0.0
      %1433 = vmatpush1.msra.mxu0 0.0
      %1434 = vmatprep.subr.mxu0 0.0
      %1435 = vmatpush1.msra.mxu0 0.0
      %1436 = vmatprep.subr.mxu0 0.0
      %1437 = vmatpush1.msra.mxu0 0.0
      %1438 = vmatprep.subr.mxu0 0.0
      %1439 = vmatpush1.msra.mxu0 0.0
      %1440 = vmatprep.subr.mxu0 0.0
      %1441 = vmatpush1.msra.mxu0 0.0
      %1442 = vmatprep.subr.mxu0 0.0
      %1443 = vmatpush1.msra.mxu0 0.0
      %1444 = vmatprep.subr.mxu0 0.0
      %1445 = vmatpush1.msra.mxu0 0.0
      %1446 = vmatprep.subr.mxu0 0.0
      %1447 = vmatpush1.msra.mxu0 0.0
      %1448 = vmatprep.subr.mxu0 0.0
      %1449 = vmatpush1.msra.mxu0 0.0
      %1450 = vmatprep.subr.mxu0 0.0
      %1451 = vmatpush1.msra.mxu0 0.0
      %1452 = vmatprep.subr.mxu0 0.0
      %1453 = vmatpush1.msra.mxu0 0.0
      %1454 = vmatprep.mubr.f32.mxu0 0.0
      %1455 = vmatmul.mubr.f32.gmra.mrb[0].mxu0 %v1311
      %v1456 = vpop.f32.mrb[0].mxu0
      %v1457 = vadd.f32 0.0, %v1456
      %v1458 = vpop.f32.mrb[0].mxu0
      %1459 = vdwg.mxu0
      %v1460 = vadd.f32 %v1293, %v1386
      %v1461 = vadd.f32 %v1294, %v1388
      %v1462 = vadd.f32 %v1295, %v1457
      %s1463 = scalar_lea.vmem %s2, 56
      %v1464 = vld [vmem:[%s1463] sm:$0xff]
      %1465 = vrot.lane.b32.xlu0 %v303, 91
      %v1466 = vpop.permute.xlu0 %1465
      %1467 = vrot.lane.b32.xlu0 %v309, 91
      %v1468 = vpop.permute.xlu0 %1467
      %1469 = vrot.lane.b32.xlu0 %v304, 91
      %v1470 = vpop.permute.xlu0 %1469
      %1471 = vrot.lane.b32.xlu0 %v306, 91
      %v1472 = vpop.permute.xlu0 %1471
      %vm1473 = vcmask 744448
      %v1474 = vsel %vm1473, %v1466, %v1468
      %v1475 = vsel %vm1473, %v1468, %v1470
      %v1476 = vsel %vm1473, %v1470, %v1472
      %v1478 = vsel %vm326, %v1464, 0
      %v1480 = vsel %vm330, %v1474, 0
      %v1482 = vsel %vm330, %v1475, 0
      %v1484 = vsel %vm330, %v1476, 0
      %1486 = vmatprep.subr.mxu0 %v1482
      %1487 = vmatpush1.msra.mxu0 %v1480
      %1488 = vmatprep.subr.mxu0 0.0
      %1489 = vmatpush1.msra.mxu0 0.0
      %1490 = vmatprep.subr.mxu0 0.0
      %1491 = vmatpush1.msra.mxu0 0.0
      %1492 = vmatprep.subr.mxu0 0.0
      %1493 = vmatpush1.msra.mxu0 0.0
      %1494 = vmatprep.subr.mxu0 0.0
      %1495 = vmatpush1.msra.mxu0 0.0
      %1496 = vmatprep.subr.mxu0 0.0
      %1497 = vmatpush1.msra.mxu0 0.0
      %1498 = vmatprep.subr.mxu0 0.0
      %1499 = vmatpush1.msra.mxu0 0.0
      %1500 = vmatprep.subr.mxu0 0.0
      %1501 = vmatpush1.msra.mxu0 0.0
      %1502 = vmatprep.subr.mxu0 0.0
      %1503 = vmatpush1.msra.mxu0 0.0
      %1504 = vmatprep.subr.mxu0 0.0
      %1505 = vmatpush1.msra.mxu0 0.0
      %1506 = vmatprep.subr.mxu0 0.0
      %1507 = vmatpush1.msra.mxu0 0.0
      %1508 = vmatprep.subr.mxu0 0.0
      %1509 = vmatpush1.msra.mxu0 0.0
      %1510 = vmatprep.subr.mxu0 0.0
      %1511 = vmatpush1.msra.mxu0 0.0
      %1512 = vmatprep.subr.mxu0 0.0
      %1513 = vmatpush1.msra.mxu0 0.0
      %1514 = vmatprep.subr.mxu0 0.0
      %1515 = vmatpush1.msra.mxu0 0.0
      %1516 = vmatprep.subr.mxu0 0.0
      %1517 = vmatpush1.msra.mxu0 0.0
      %1518 = vmatprep.subr.mxu0 0.0
      %1519 = vmatpush1.msra.mxu0 0.0
      %1520 = vmatprep.subr.mxu0 0.0
      %1521 = vmatpush1.msra.mxu0 0.0
      %1522 = vmatprep.subr.mxu0 0.0
      %1523 = vmatpush1.msra.mxu0 0.0
      %1524 = vmatprep.subr.mxu0 0.0
      %1525 = vmatpush1.msra.mxu0 0.0
      %1526 = vmatprep.subr.mxu0 0.0
      %1527 = vmatpush1.msra.mxu0 0.0
      %1528 = vmatprep.subr.mxu0 0.0
      %1529 = vmatpush1.msra.mxu0 0.0
      %1530 = vmatprep.subr.mxu0 0.0
      %1531 = vmatpush1.msra.mxu0 0.0
      %1532 = vmatprep.subr.mxu0 0.0
      %1533 = vmatpush1.msra.mxu0 0.0
      %1534 = vmatprep.subr.mxu0 0.0
      %1535 = vmatpush1.msra.mxu0 0.0
      %1536 = vmatprep.subr.mxu0 0.0
      %1537 = vmatpush1.msra.mxu0 0.0
      %1538 = vmatprep.subr.mxu0 0.0
      %1539 = vmatpush1.msra.mxu0 0.0
      %1540 = vmatprep.subr.mxu0 0.0
      %1541 = vmatpush1.msra.mxu0 0.0
      %1542 = vmatprep.subr.mxu0 0.0
      %1543 = vmatpush1.msra.mxu0 0.0
      %1544 = vmatprep.subr.mxu0 0.0
      %1545 = vmatpush1.msra.mxu0 0.0
      %1546 = vmatprep.subr.mxu0 0.0
      %1547 = vmatpush1.msra.mxu0 0.0
      %1548 = vmatprep.subr.mxu0 0.0
      %1549 = vmatpush1.msra.mxu0 0.0
      %1550 = vmatprep.mubr.f32.mxu0 0.0
      %1551 = vmatmul.mubr.f32.gmra.mrb[0].mxu0 %v1478
      %v1552 = vpop.f32.mrb[0].mxu0
      %v1553 = vadd.f32 0.0, %v1552
      %v1554 = vpop.f32.mrb[0].mxu0
      %v1555 = vadd.f32 0.0, %v1554
      %1556 = vdwg.mxu0
      %1557 = vmatprep.subr.mxu0 0.0
      %1558 = vmatpush1.msra.mxu0 %v1484
      %1559 = vmatprep.subr.mxu0 0.0
      %1560 = vmatpush1.msra.mxu0 0.0
      %1561 = vmatprep.subr.mxu0 0.0
      %1562 = vmatpush1.msra.mxu0 0.0
      %1563 = vmatprep.subr.mxu0 0.0
      %1564 = vmatpush1.msra.mxu0 0.0
      %1565 = vmatprep.subr.mxu0 0.0
      %1566 = vmatpush1.msra.mxu0 0.0
      %1567 = vmatprep.subr.mxu0 0.0
      %1568 = vmatpush1.msra.mxu0 0.0
      %1569 = vmatprep.subr.mxu0 0.0
      %1570 = vmatpush1.msra.mxu0 0.0
      %1571 = vmatprep.subr.mxu0 0.0
      %1572 = vmatpush1.msra.mxu0 0.0
      %1573 = vmatprep.subr.mxu0 0.0
      %1574 = vmatpush1.msra.mxu0 0.0
      %1575 = vmatprep.subr.mxu0 0.0
      %1576 = vmatpush1.msra.mxu0 0.0
      %1577 = vmatprep.subr.mxu0 0.0
      %1578 = vmatpush1.msra.mxu0 0.0
      %1579 = vmatprep.subr.mxu0 0.0
      %1580 = vmatpush1.msra.mxu0 0.0
      %1581 = vmatprep.subr.mxu0 0.0
      %1582 = vmatpush1.msra.mxu0 0.0
      %1583 = vmatprep.subr.mxu0 0.0
      %1584 = vmatpush1.msra.mxu0 0.0
      %1585 = vmatprep.subr.mxu0 0.0
      %1586 = vmatpush1.msra.mxu0 0.0
      %1587 = vmatprep.subr.mxu0 0.0
      %1588 = vmatpush1.msra.mxu0 0.0
      %1589 = vmatprep.subr.mxu0 0.0
      %1590 = vmatpush1.msra.mxu0 0.0
      %1591 = vmatprep.subr.mxu0 0.0
      %1592 = vmatpush1.msra.mxu0 0.0
      %1593 = vmatprep.subr.mxu0 0.0
      %1594 = vmatpush1.msra.mxu0 0.0
      %1595 = vmatprep.subr.mxu0 0.0
      %1596 = vmatpush1.msra.mxu0 0.0
      %1597 = vmatprep.subr.mxu0 0.0
      %1598 = vmatpush1.msra.mxu0 0.0
      %1599 = vmatprep.subr.mxu0 0.0
      %1600 = vmatpush1.msra.mxu0 0.0
      %1601 = vmatprep.subr.mxu0 0.0
      %1602 = vmatpush1.msra.mxu0 0.0
      %1603 = vmatprep.subr.mxu0 0.0
      %1604 = vmatpush1.msra.mxu0 0.0
      %1605 = vmatprep.subr.mxu0 0.0
      %1606 = vmatpush1.msra.mxu0 0.0
      %1607 = vmatprep.subr.mxu0 0.0
      %1608 = vmatpush1.msra.mxu0 0.0
      %1609 = vmatprep.subr.mxu0 0.0
      %1610 = vmatpush1.msra.mxu0 0.0
      %1611 = vmatprep.subr.mxu0 0.0
      %1612 = vmatpush1.msra.mxu0 0.0
      %1613 = vmatprep.subr.mxu0 0.0
      %1614 = vmatpush1.msra.mxu0 0.0
      %1615 = vmatprep.subr.mxu0 0.0
      %1616 = vmatpush1.msra.mxu0 0.0
      %1617 = vmatprep.subr.mxu0 0.0
      %1618 = vmatpush1.msra.mxu0 0.0
      %1619 = vmatprep.subr.mxu0 0.0
      %1620 = vmatpush1.msra.mxu0 0.0
      %1621 = vmatprep.mubr.f32.mxu0 0.0
      %1622 = vmatmul.mubr.f32.gmra.mrb[0].mxu0 %v1478
      %v1623 = vpop.f32.mrb[0].mxu0
      %v1624 = vadd.f32 0.0, %v1623
      %v1625 = vpop.f32.mrb[0].mxu0
      %1626 = vdwg.mxu0
      %v1627 = vadd.f32 %v1460, %v1553
      %v1628 = vadd.f32 %v1461, %v1555
      %v1629 = vadd.f32 %v1462, %v1624
      %s1630 = scalar_lea.vmem %s2, 64
      %v1631 = vld [vmem:[%s1630] sm:$0xff]
      %1632 = vrot.lane.b32.xlu0 %v303, 90
      %v1633 = vpop.permute.xlu0 %1632
      %1634 = vrot.lane.b32.xlu0 %v309, 90
      %v1635 = vpop.permute.xlu0 %1634
      %1636 = vrot.lane.b32.xlu0 %v304, 90
      %v1637 = vpop.permute.xlu0 %1636
      %1638 = vrot.lane.b32.xlu0 %v306, 90
      %v1639 = vpop.permute.xlu0 %1638
      %vm1640 = vcmask 736256
      %v1641 = vsel %vm1640, %v1633, %v1635
      %v1642 = vsel %vm1640, %v1635, %v1637
      %v1643 = vsel %vm1640, %v1637, %v1639
      %v1645 = vsel %vm326, %v1631, 0
      %v1647 = vsel %vm330, %v1641, 0
      %v1649 = vsel %vm330, %v1642, 0
      %v1651 = vsel %vm330, %v1643, 0
      %1653 = vmatprep.subr.mxu0 %v1649
      %1654 = vmatpush1.msra.mxu0 %v1647
      %1655 = vmatprep.subr.mxu0 0.0
      %1656 = vmatpush1.msra.mxu0 0.0
      %1657 = vmatprep.subr.mxu0 0.0
      %1658 = vmatpush1.msra.mxu0 0.0
      %1659 = vmatprep.subr.mxu0 0.0
      %1660 = vmatpush1.msra.mxu0 0.0
      %1661 = vmatprep.subr.mxu0 0.0
      %1662 = vmatpush1.msra.mxu0 0.0
      %1663 = vmatprep.subr.mxu0 0.0
      %1664 = vmatpush1.msra.mxu0 0.0
      %1665 = vmatprep.subr.mxu0 0.0
      %1666 = vmatpush1.msra.mxu0 0.0
      %1667 = vmatprep.subr.mxu0 0.0
      %1668 = vmatpush1.msra.mxu0 0.0
      %1669 = vmatprep.subr.mxu0 0.0
      %1670 = vmatpush1.msra.mxu0 0.0
      %1671 = vmatprep.subr.mxu0 0.0
      %1672 = vmatpush1.msra.mxu0 0.0
      %1673 = vmatprep.subr.mxu0 0.0
      %1674 = vmatpush1.msra.mxu0 0.0
      %1675 = vmatprep.subr.mxu0 0.0
      %1676 = vmatpush1.msra.mxu0 0.0
      %1677 = vmatprep.subr.mxu0 0.0
      %1678 = vmatpush1.msra.mxu0 0.0
      %1679 = vmatprep.subr.mxu0 0.0
      %1680 = vmatpush1.msra.mxu0 0.0
      %1681 = vmatprep.subr.mxu0 0.0
      %1682 = vmatpush1.msra.mxu0 0.0
      %1683 = vmatprep.subr.mxu0 0.0
      %1684 = vmatpush1.msra.mxu0 0.0
      %1685 = vmatprep.subr.mxu0 0.0
      %1686 = vmatpush1.msra.mxu0 0.0
      %1687 = vmatprep.subr.mxu0 0.0
      %1688 = vmatpush1.msra.mxu0 0.0
      %1689 = vmatprep.subr.mxu0 0.0
      %1690 = vmatpush1.msra.mxu0 0.0
      %1691 = vmatprep.subr.mxu0 0.0
      %1692 = vmatpush1.msra.mxu0 0.0
      %1693 = vmatprep.subr.mxu0 0.0
      %1694 = vmatpush1.msra.mxu0 0.0
      %1695 = vmatprep.subr.mxu0 0.0
      %1696 = vmatpush1.msra.mxu0 0.0
      %1697 = vmatprep.subr.mxu0 0.0
      %1698 = vmatpush1.msra.mxu0 0.0
      %1699 = vmatprep.subr.mxu0 0.0
      %1700 = vmatpush1.msra.mxu0 0.0
      %1701 = vmatprep.subr.mxu0 0.0
      %1702 = vmatpush1.msra.mxu0 0.0
      %1703 = vmatprep.subr.mxu0 0.0
      %1704 = vmatpush1.msra.mxu0 0.0
      %1705 = vmatprep.subr.mxu0 0.0
      %1706 = vmatpush1.msra.mxu0 0.0
      %1707 = vmatprep.subr.mxu0 0.0
      %1708 = vmatpush1.msra.mxu0 0.0
      %1709 = vmatprep.subr.mxu0 0.0
      %1710 = vmatpush1.msra.mxu0 0.0
      %1711 = vmatprep.subr.mxu0 0.0
      %1712 = vmatpush1.msra.mxu0 0.0
      %1713 = vmatprep.subr.mxu0 0.0
      %1714 = vmatpush1.msra.mxu0 0.0
      %1715 = vmatprep.subr.mxu0 0.0
      %1716 = vmatpush1.msra.mxu0 0.0
      %1717 = vmatprep.mubr.f32.mxu0 0.0
      %1718 = vmatmul.mubr.f32.gmra.mrb[0].mxu0 %v1645
      %v1719 = vpop.f32.mrb[0].mxu0
      %v1720 = vadd.f32 0.0, %v1719
      %v1721 = vpop.f32.mrb[0].mxu0
      %v1722 = vadd.f32 0.0, %v1721
      %1723 = vdwg.mxu0
      %1724 = vmatprep.subr.mxu0 0.0
      %1725 = vmatpush1.msra.mxu0 %v1651
      %1726 = vmatprep.subr.mxu0 0.0
      %1727 = vmatpush1.msra.mxu0 0.0
      %1728 = vmatprep.subr.mxu0 0.0
      %1729 = vmatpush1.msra.mxu0 0.0
      %1730 = vmatprep.subr.mxu0 0.0
      %1731 = vmatpush1.msra.mxu0 0.0
      %1732 = vmatprep.subr.mxu0 0.0
      %1733 = vmatpush1.msra.mxu0 0.0
      %1734 = vmatprep.subr.mxu0 0.0
      %1735 = vmatpush1.msra.mxu0 0.0
      %1736 = vmatprep.subr.mxu0 0.0
      %1737 = vmatpush1.msra.mxu0 0.0
      %1738 = vmatprep.subr.mxu0 0.0
      %1739 = vmatpush1.msra.mxu0 0.0
      %1740 = vmatprep.subr.mxu0 0.0
      %1741 = vmatpush1.msra.mxu0 0.0
      %1742 = vmatprep.subr.mxu0 0.0
      %1743 = vmatpush1.msra.mxu0 0.0
      %1744 = vmatprep.subr.mxu0 0.0
      %1745 = vmatpush1.msra.mxu0 0.0
      %1746 = vmatprep.subr.mxu0 0.0
      %1747 = vmatpush1.msra.mxu0 0.0
      %1748 = vmatprep.subr.mxu0 0.0
      %1749 = vmatpush1.msra.mxu0 0.0
      %1750 = vmatprep.subr.mxu0 0.0
      %1751 = vmatpush1.msra.mxu0 0.0
      %1752 = vmatprep.subr.mxu0 0.0
      %1753 = vmatpush1.msra.mxu0 0.0
      %1754 = vmatprep.subr.mxu0 0.0
      %1755 = vmatpush1.msra.mxu0 0.0
      %1756 = vmatprep.subr.mxu0 0.0
      %1757 = vmatpush1.msra.mxu0 0.0
      %1758 = vmatprep.subr.mxu0 0.0
      %1759 = vmatpush1.msra.mxu0 0.0
      %1760 = vmatprep.subr.mxu0 0.0
      %1761 = vmatpush1.msra.mxu0 0.0
      %1762 = vmatprep.subr.mxu0 0.0
      %1763 = vmatpush1.msra.mxu0 0.0
      %1764 = vmatprep.subr.mxu0 0.0
      %1765 = vmatpush1.msra.mxu0 0.0
      %1766 = vmatprep.subr.mxu0 0.0
      %1767 = vmatpush1.msra.mxu0 0.0
      %1768 = vmatprep.subr.mxu0 0.0
      %1769 = vmatpush1.msra.mxu0 0.0
      %1770 = vmatprep.subr.mxu0 0.0
      %1771 = vmatpush1.msra.mxu0 0.0
      %1772 = vmatprep.subr.mxu0 0.0
      %1773 = vmatpush1.msra.mxu0 0.0
      %1774 = vmatprep.subr.mxu0 0.0
      %1775 = vmatpush1.msra.mxu0 0.0
      %1776 = vmatprep.subr.mxu0 0.0
      %1777 = vmatpush1.msra.mxu0 0.0
      %1778 = vmatprep.subr.mxu0 0.0
      %1779 = vmatpush1.msra.mxu0 0.0
      %1780 = vmatprep.subr.mxu0 0.0
      %1781 = vmatpush1.msra.mxu0 0.0
      %1782 = vmatprep.subr.mxu0 0.0
      %1783 = vmatpush1.msra.mxu0 0.0
      %1784 = vmatprep.subr.mxu0 0.0
      %1785 = vmatpush1.msra.mxu0 0.0
      %1786 = vmatprep.subr.mxu0 0.0
      %1787 = vmatpush1.msra.mxu0 0.0
      %1788 = vmatprep.mubr.f32.mxu0 0.0
      %1789 = vmatmul.mubr.f32.gmra.mrb[0].mxu0 %v1645
      %v1790 = vpop.f32.mrb[0].mxu0
      %v1791 = vadd.f32 0.0, %v1790
      %v1792 = vpop.f32.mrb[0].mxu0
      %1793 = vdwg.mxu0
      %v1794 = vadd.f32 %v1627, %v1720
      %v1795 = vadd.f32 %v1628, %v1722
      %v1796 = vadd.f32 %v1629, %v1791
      %v1797 = vld [vmem:[%s3] sm:$0xff]
      %1799 = vset.pattern.permute.xlu0 0
      %1800 = vperm.xlu0 %1799, %v1797
      %v1801 = vpop.permute.xlu0 %1800
      %v1803 = vadd.f32 %v1794, %v1801
      %v1804 = vadd.f32 %v1795, %v1801
      %v1805 = vadd.f32 %v1796, %v1801
      %v1806 = vmax.f32 %v1803, 0.0
      %v1807 = vmax.f32 %v1804, 0.0
      %v1808 = vmax.f32 %v1805, 0.0
      %1809 = vst [vmem:[%s300] sm:$0xff] %v1806
      %1810 = vst [vmem:[%s300 + $0x8] sm:$0xff] %v1807
      %1811 = vst [vmem:[%s300 + $0x10] sm:$0xff] %v1808
      %s1812 = smul.u32 3, %s20
      %p1813 = scmp.lt.s32.totalorder %s19, 1
      %s1814 = scalar_select %p1813, %s19, 1
      %p1815 = scmp.lt.s32.totalorder %s1812, 2
      %s1816 = scalar_select %p1815, %s1812, 2
      %s1817 = smul.addr %s1814, 3
      %s1818 = sadd.s32 %s1816, %s1817
      %s1819 = smul.addr %s1818, 8
      %s1820 = scalar_lea.vmem %s4, %s1819
      // Predicated region
      $region37: #{inf_input_forward.1} parent=35 // pred_check
        %p1821 = pneg %p149
      $region38: #{inf_input_forward.1} parent=35 // pred_check_branch
        %1823 = sbr.rel (%p1821) target = $region40
      $region39: #{inf_input_forward.1} parent=35 // pred_region
        %s1824 = smul.u32 3, %s20
      $region40: #{inf_input_forward.1} parent=35 // pred_fallthru
        _
    $region36: #{inf_input_forward.1} parent=5 // pred_fallthru
      _
    %p1825 = scmp.le.s32.totalorder 2, %s10
    // Predicated region
    $region41: #{inf_input_forward.1} parent=5 // pred_check
      %p1826 = pneg %p1825
    $region42: #{inf_input_forward.1} parent=5 // pred_check_branch
      %1828 = sbr.rel (%p1826) target = $region44
    $region43: #{inf_input_forward.1} parent=5 // pred_region
      %s1829 = ssub.s32 %s10, 2
      // Predicated region
      $region45: #{inf_input_forward.1} parent=43 // pred_check
        %p1830 = pneg %p155
      $region46: #{inf_input_forward.1} parent=43 // pred_check_branch
        %1832 = sbr.rel (%p1830) target = $region48
      $region47: #{inf_input_forward.1} parent=43 // pred_region
        %s1833 = smul.u32 3, %s22
        %p1834 = scmp.lt.s32.totalorder %s21, 1
        %s1835 = scalar_select %p1834, %s21, 1
        %p1836 = scmp.lt.s32.totalorder %s1833, 2
        %s1837 = scalar_select %p1836, %s1833, 2
        %s1838 = smul.addr %s1835, 3
        %s1839 = sadd.s32 %s1837, %s1838
        %s1840 = smul.addr %s1839, 8
        %s1841 = scalar_lea.vmem %s4, %s1840
      $region48: #{inf_input_forward.1} parent=43 // pred_fallthru
        _
    $region44: #{inf_input_forward.1} parent=5 // pred_fallthru
      _
  $region6: #{inf_input_forward.1} parent=0 // loop_footer
    %s14 = sadd.s32 1, %s10
  $region7: #{inf_input_forward.1} parent=0 // loop_footer_branch
    %9 = sbr.rel target = $region3
  $region8: #{inf_input_forward.1} parent=0 // loop_exit
    _

</llo_original>
